<compile_context>
chip_gen: v5e
topology: v5e:2x2
jax: 0.10.0
libtpu: 0.0.40
codegen_flags: <defaults>
</compile_context>

<pallas_src>
import functools

import jax
import jax.numpy as jnp
import numpy as np
from jax.experimental import pallas as pl
from jax.experimental.pallas import tpu as pltpu

K = 7                              # kernel_size
P = 3                              # padding (kernel_size == 7 -> padding 3)
_LANE = 128
_HEADROOM = 16 * 1024 * 1024       # VMEM headroom for Mosaic internal scratch


def _vmem_capacity_bytes():
    """Generation-aware VMEM capacity (v5e/v6e 128 MiB, v7x 64 MiB per TC)."""
    try:
        info = pltpu.get_tpu_info()
        for attr in ("vmem_capacity_bytes", "vmem_size_bytes", "vmem_bytes"):
            v = getattr(info, attr, None)
            if v:
                return int(v)
    except Exception:
        pass
    return 64 * 1024 * 1024        # conservative default (v7x per-TensorCore)


def _vmem_limit(need, budget):
    if need <= (16 << 20):
        return None                # default scoped limit is plenty
    return int(min(need, max(budget, 16 << 20)))


def _attention_map(maxp, avgp, w_ref, row_ids, col_ids, H, W):
    """sigmoid(7x7 'same' conv over the [max; avg] pooled maps), flat layout.

    maxp, avgp : (1, H*W) f32 pooled maps (row-major flattened)
    w_ref      : SMEM f32[2*K*K], PyTorch (1, 2, K, K) weight flattened
    row_ids    : (1, H*W) int32 -- h index of each flat position
    col_ids    : (1, H*W) int32 -- w index of each flat position

    A tap (ky, kx) reads padded position (h+ky, w+kx) == original
    (h+dy, w+dx), dy=ky-P, dx=kx-P, i.e. flat offset i + dy*W + dx.  Shifts
    are lane rolls; the Conv2d zero padding becomes the row/col masks.
    Column shifts+masks are shared across all 7 ky taps (14 rolls total
    instead of 2*49 window slices); everything stays lane-dense on VPU/XLU.
    """
    # Stage 1: column shifts (dx) with column masks, shared by both maps.
    qm, qa = [], []
    for kx in range(K):
        dx = kx - P
        if dx == 0:
            qm.append(maxp)
            qa.append(avgp)
            continue
        ok = jnp.logical_and(col_ids >= -dx, col_ids < W - dx)
        qm.append(jnp.where(ok, jnp.roll(maxp, -dx, axis=1), 0.0))
        qa.append(jnp.where(ok, jnp.roll(avgp, -dx, axis=1), 0.0))

    # Stage 2: per-row-offset weighted sums, then row shift (dy*W) + row mask.
    # TODO(synk): the max/avg maps could be stacked into one (2, HW) operand to
    # halve the tap instruction count; kept split for lowering simplicity since
    # the conv is already hidden under the HBM-bound multiply-back.
    out = jnp.zeros_like(maxp)
    for ky in range(K):
        dy = ky - P
        tmp = jnp.zeros_like(maxp)
        for kx in range(K):
            wm = w_ref[ky * K + kx]              # max-pool channel weight
            wa = w_ref[K * K + ky * K + kx]      # avg-pool channel weight
            tmp = tmp + wm * qm[kx] + wa * qa[kx]
        if dy == 0:
            out = out + tmp
        else:
            ok = jnp.logical_and(row_ids >= -dy, row_ids < H - dy)
            out = out + jnp.where(ok, jnp.roll(tmp, -dy * W, axis=1), 0.0)
    return jax.nn.sigmoid(out)


# --------------------------- fused single-pass path -------------------------

def _fused_kernel(w_ref, ids_ref, x_ref, o_ref, *, H, W):
    """One batch element per grid step: pool -> conv -> sigmoid -> multiply."""
    x = x_ref[0]                                         # (C, HW) lane-dense
    C = x.shape[0]
    # Pooling without a full-block f32 copy: max in native dtype (cast the
    # tiny result); mean via an f32-accumulated sum.
    maxp = jnp.max(x, axis=0, keepdims=True).astype(jnp.float32)
    avgp = jnp.sum(x, axis=0, keepdims=True, dtype=jnp.float32) * (1.0 / C)
    attn = _attention_map(maxp, avgp, w_ref,
                          ids_ref[0:1, :], ids_ref[1:2, :], H, W)
    # Note: for sub-f32 inputs the attention map is rounded to x.dtype before
    # the multiply (output stays in x.dtype, as the PyTorch module would).
    o_ref[0] = x * attn.astype(x.dtype)


# --------------------------- tiled two-pass path ----------------------------

def _pool_kernel(x_ref, pooled_ref):
    x = x_ref[0]                                         # (C, tile)
    C = x.shape[0]
    pooled_ref[0, 0:1, :] = jnp.max(x, axis=0, keepdims=True).astype(jnp.float32)
    pooled_ref[0, 1:2, :] = (
        jnp.sum(x, axis=0, keepdims=True, dtype=jnp.float32) * (1.0 / C))


def _apply_kernel(w_ref, ids_ref, pooled_ref, x_ref, o_ref, attn_ref,
                  *, H, W, tile):
    t = pl.program_id(1)

    @pl.when(t == 0)
    def _():
        # The pooled map is tiny: compute the whole attention map once per
        # batch element and cache it in VMEM across the (sequential) spatial
        # axis -- no halo exchange required.
        maxp = pooled_ref[0, 0:1, :]
        avgp = pooled_ref[0, 1:2, :]
        attn_ref[...] = _attention_map(maxp, avgp, w_ref,
                                       ids_ref[0:1, :], ids_ref[1:2, :], H, W)

    x = x_ref[0]                                         # (C, tile)
    start = pl.multiple_of(t * tile, _LANE)
    a = attn_ref[:, pl.ds(start, tile)]                  # (1, tile) f32
    o_ref[0] = x * a.astype(x.dtype)


# --------------------------------- wrapper ----------------------------------

def _pick_tile(HW, per_elem_bytes, fixed_bytes, budget):
    """Largest 128-aligned divisor of HW whose per-step VMEM need fits."""
    divisors = [d for d in range(_LANE, HW, _LANE) if HW % d == 0]
    if not divisors:
        return None
    fitting = [d for d in divisors if d * per_elem_bytes + fixed_bytes <= budget]
    return max(fitting) if fitting else min(divisors)


def spatial_attention(x, w, *, max_vmem_bytes=None, force_tile_elems=None):
    """CBAM spatial attention: sigmoid(conv7x7([max_c(x); mean_c(x)])) * x.

    x : (B, C, H, W);  w : (1, 2, 7, 7) conv weight (bias-free).
    max_vmem_bytes   : override the detected VMEM budget (testing).
    force_tile_elems : force the tiled path with this flat tile size (testing).
    """
    B, C, H, W = x.shape
    HW = H * W
    isize = x.dtype.itemsize

    x_flat = x.reshape(B, C, HW)                     # free: contiguous NCHW
    w_flat = w.reshape(-1).astype(jnp.float32)       # (2*K*K,) -> SMEM
    flat = jnp.arange(HW, dtype=jnp.int32)
    ids = jnp.stack([flat // W, flat % W], axis=0)   # (2, HW) row / col index

    budget = (int(max_vmem_bytes) if max_vmem_bytes is not None
              else _vmem_capacity_bytes() - _HEADROOM)

    margin = (2 << 20) + 16 * HW * 4 + 2 * HW * 4    # conv temps, ids, slack
    fused_need = 4 * C * HW * isize + margin         # in+out, double-buffered

    tile = None
    if force_tile_elems is not None:
        tile = int(force_tile_elems)
        assert tile % _LANE == 0 and HW % tile == 0, "bad forced tile size"
    elif fused_need > budget:
        fixed = margin + 2 * (2 * HW * 4) + HW * 4   # pooled blocks + attn
        tile = _pick_tile(HW, 4 * C * isize, fixed, budget)

    if tile is None or tile >= HW:
        # ------------------------ fused path ------------------------
        # TODO(synk): if fused_need > budget and HW has no 128-aligned divisor
        # this may still exceed VMEM; a channel-tiled fallback would cover it.
        out_flat = pl.pallas_call(
            functools.partial(_fused_kernel, H=H, W=W),
            out_shape=jax.ShapeDtypeStruct((B, C, HW), x.dtype),
            grid=(B,),
            in_specs=[
                pl.BlockSpec(memory_space=pltpu.MemorySpace.SMEM),   # weights
                pl.BlockSpec((2, HW), lambda b: (0, 0)),             # ids
                pl.BlockSpec((1, C, HW), lambda b: (b, 0, 0)),       # x
            ],
            out_specs=pl.BlockSpec((1, C, HW), lambda b: (b, 0, 0)),
            compiler_params=pltpu.CompilerParams(
                dimension_semantics=("parallel",),
                vmem_limit_bytes=_vmem_limit(fused_need, budget),
            ),
        )(w_flat, ids, x_flat)
        return out_flat.reshape(B, C, H, W)

    # ------------------------ tiled path ------------------------
    T = HW // tile

    pool_need = 2 * C * tile * isize + 2 * 2 * tile * 4 + (2 << 20)
    pooled = pl.pallas_call(
        _pool_kernel,
        out_shape=jax.ShapeDtypeStruct((B, 2, HW), jnp.float32),
        grid=(B, T),
        in_specs=[pl.BlockSpec((1, C, tile), lambda b, t: (b, 0, t))],
        out_specs=pl.BlockSpec((1, 2, tile), lambda b, t: (b, 0, t)),
        compiler_params=pltpu.CompilerParams(
            dimension_semantics=("parallel", "parallel"),
            vmem_limit_bytes=_vmem_limit(pool_need, budget),
        ),
    )(x_flat)

    apply_need = 4 * C * tile * isize + 2 * (2 * HW * 4) + HW * 4 + margin
    # TODO(synk): on v7x, sweep pipeline_mode=pl.Buffered(3) on the x spec if
    # xprof shows exposed DMA at tile boundaries.
    out_flat = pl.pallas_call(
        functools.partial(_apply_kernel, H=H, W=W, tile=tile),
        out_shape=jax.ShapeDtypeStruct((B, C, HW), x.dtype),
        grid=(B, T),
        in_specs=[
            pl.BlockSpec(memory_space=pltpu.MemorySpace.SMEM),       # weights
            pl.BlockSpec((2, HW), lambda b, t: (0, 0)),              # ids
            pl.BlockSpec((1, 2, HW), lambda b, t: (b, 0, 0)),        # pooled
            pl.BlockSpec((1, C, tile), lambda b, t: (b, 0, t)),      # x tile
        ],
        out_specs=pl.BlockSpec((1, C, tile), lambda b, t: (b, 0, t)),
        scratch_shapes=[pltpu.VMEM((1, HW), jnp.float32)],           # attention
        compiler_params=pltpu.CompilerParams(
            # Spatial axis must be sequential: the attention scratch is filled
            # at t == 0 and reused for t > 0 within each batch element.
            dimension_semantics=("parallel", "arbitrary"),
            vmem_limit_bytes=_vmem_limit(apply_need, budget),
        ),
    )(w_flat, ids, pooled, x_flat)
    return out_flat.reshape(B, C, H, W)


def ref_forward(x, w):
    """Pure-JAX reference matching the PyTorch module's intended forward."""
    max_map = jnp.max(x, axis=1, keepdims=True)
    avg_map = jnp.mean(x, axis=1, keepdims=True)
    pool = jnp.concatenate([max_map, avg_map], axis=1)
    out = jax.lax.conv_general_dilated(
        pool, w, window_strides=(1, 1), padding=((P, P), (P, P)),
        dimension_numbers=("NCHW", "OIHW", "NCHW"))
    return jax.nn.sigmoid(out) * x


if __name__ == "__main__":
    key = jax.random.PRNGKey(0)
    kx_key, kw_key = jax.random.split(key)

    B, C, H, W = 2, 4, 16, 16
    x = jax.random.normal(kx_key, (B, C, H, W), dtype=jnp.float32)
    # Deterministic conv-weight init (Conv2d(2, 1, 7, bias=False) shape).
    fan_in = 2 * K * K
    w = jax.random.normal(kw_key, (1, 2, K, K), dtype=jnp.float32) / np.sqrt(fan_in)

    ref = ref_forward(x, w)

    # Fused single-pass path (default at this size).
    out = spatial_attention(x, w)
    jax.block_until_ready(out)
    np.testing.assert_allclose(np.asarray(out), np.asarray(ref),
                               rtol=1e-5, atol=1e-5)

    # Tiled fallback path (forced), exercising the pool + apply kernels.
    out_tiled = spatial_attention(x, w, force_tile_elems=128)
    jax.block_until_ready(out_tiled)
    np.testing.assert_allclose(np.asarray(out_tiled), np.asarray(ref),
                               rtol=1e-5, atol=1e-5)

    print("KERNEL_OK")
</pallas_src>

<mosaic_0001>
module attributes {stable_mosaic.version = 11 : i64} {
  func.func @_fused_kernel(%arg0: i32, %arg1: memref<98xf32, #tpu.memory_space<smem>>, %arg2: memref<2x256xi32, #tpu.memory_space<vmem>>, %arg3: memref<1x4x256xf32, #tpu.memory_space<vmem>>, %arg4: memref<1x4x256xf32, #tpu.memory_space<vmem>>) attributes {dimension_semantics = [#tpu.dimension_semantics<parallel>], iteration_bounds = array<i64: 2>, scalar_prefetch = 0 : i64, scratch_operands = 0 : i64, tpu.core_type = #tpu.core_type<tc>, window_params = [{transform_indices = @transform_0, window_bounds = array<i64: 98>}, {pipeline_mode = #tpu.pipeline_mode<synchronous>, transform_indices = @transform_1, window_bounds = array<i64: 2, 256>}, {transform_indices = @transform_2, window_bounds = array<i64: 1, 4, 256>}, {transform_indices = @transform_3, window_bounds = array<i64: 1, 4, 256>}]} {
    %c0 = arith.constant 0 : index
    %c0_0 = arith.constant 0 : index
    %c0_1 = arith.constant 0 : index
    %0 = vector.load %arg3[%c0, %c0_0, %c0_1] : memref<1x4x256xf32, #tpu.memory_space<vmem>>, vector<1x4x256xf32>
    %1 = vector.shape_cast %0 : vector<1x4x256xf32> to vector<4x256xf32>
    %cst = arith.constant dense<0xFF800000> : vector<256xf32>
    %2 = vector.multi_reduction <maximumf>, %1, %cst [0] : vector<4x256xf32> to vector<256xf32>
    %3 = vector.shape_cast %2 : vector<256xf32> to vector<1x256xf32>
    %cst_2 = arith.constant dense<0.000000e+00> : vector<256xf32>
    %4 = vector.multi_reduction <add>, %1, %cst_2 [0] : vector<4x256xf32> to vector<256xf32>
    %5 = vector.shape_cast %4 : vector<256xf32> to vector<1x256xf32>
    %cst_3 = arith.constant 2.500000e-01 : f32
    %6 = vector.broadcast %cst_3 : f32 to vector<1x256xf32>
    %7 = arith.mulf %5, %6 : vector<1x256xf32>
    %c0_4 = arith.constant 0 : index
    %c0_5 = arith.constant 0 : index
    %8 = vector.load %arg2[%c0_4, %c0_5] : memref<2x256xi32, #tpu.memory_space<vmem>>, vector<1x256xi32>
    %c1 = arith.constant 1 : index
    %c0_6 = arith.constant 0 : index
    %9 = vector.load %arg2[%c1, %c0_6] : memref<2x256xi32, #tpu.memory_space<vmem>>, vector<1x256xi32>
    %c3_i32 = arith.constant 3 : i32
    %10 = vector.broadcast %c3_i32 : i32 to vector<1x256xi32>
    %11 = arith.cmpi sge, %9, %10 : vector<1x256xi32>
    %c19_i32 = arith.constant 19 : i32
    %12 = vector.broadcast %c19_i32 : i32 to vector<1x256xi32>
    %13 = arith.cmpi slt, %9, %12 : vector<1x256xi32>
    %14 = arith.andi %11, %13 : vector<1x256xi1>
    %15 = vector.extract_strided_slice %3 {offsets = [0, 253], sizes = [1, 3], strides = [1, 1]} : vector<1x256xf32> to vector<1x3xf32>
    %16 = vector.extract_strided_slice %3 {offsets = [0, 0], sizes = [1, 253], strides = [1, 1]} : vector<1x256xf32> to vector<1x253xf32>
    %17 = tpu.concatenate %15, %16 in 1 : vector<1x3xf32>, vector<1x253xf32> -> vector<1x256xf32>
    %cst_7 = arith.constant 0.000000e+00 : f32
    %18 = vector.broadcast %cst_7 : f32 to vector<1x256xf32>
    %19 = arith.select %14, %17, %18 : vector<1x256xi1>, vector<1x256xf32>
    %20 = vector.extract_strided_slice %7 {offsets = [0, 253], sizes = [1, 3], strides = [1, 1]} : vector<1x256xf32> to vector<1x3xf32>
    %21 = vector.extract_strided_slice %7 {offsets = [0, 0], sizes = [1, 253], strides = [1, 1]} : vector<1x256xf32> to vector<1x253xf32>
    %22 = tpu.concatenate %20, %21 in 1 : vector<1x3xf32>, vector<1x253xf32> -> vector<1x256xf32>
    %cst_8 = arith.constant 0.000000e+00 : f32
    %23 = vector.broadcast %cst_8 : f32 to vector<1x256xf32>
    %24 = arith.select %14, %22, %23 : vector<1x256xi1>, vector<1x256xf32>
    %c2_i32 = arith.constant 2 : i32
    %25 = vector.broadcast %c2_i32 : i32 to vector<1x256xi32>
    %26 = arith.cmpi sge, %9, %25 : vector<1x256xi32>
    %c18_i32 = arith.constant 18 : i32
    %27 = vector.broadcast %c18_i32 : i32 to vector<1x256xi32>
    %28 = arith.cmpi slt, %9, %27 : vector<1x256xi32>
    %29 = arith.andi %26, %28 : vector<1x256xi1>
    %30 = vector.extract_strided_slice %3 {offsets = [0, 254], sizes = [1, 2], strides = [1, 1]} : vector<1x256xf32> to vector<1x2xf32>
    %31 = vector.extract_strided_slice %3 {offsets = [0, 0], sizes = [1, 254], strides = [1, 1]} : vector<1x256xf32> to vector<1x254xf32>
    %32 = tpu.concatenate %30, %31 in 1 : vector<1x2xf32>, vector<1x254xf32> -> vector<1x256xf32>
    %cst_9 = arith.constant 0.000000e+00 : f32
    %33 = vector.broadcast %cst_9 : f32 to vector<1x256xf32>
    %34 = arith.select %29, %32, %33 : vector<1x256xi1>, vector<1x256xf32>
    %35 = vector.extract_strided_slice %7 {offsets = [0, 254], sizes = [1, 2], strides = [1, 1]} : vector<1x256xf32> to vector<1x2xf32>
    %36 = vector.extract_strided_slice %7 {offsets = [0, 0], sizes = [1, 254], strides = [1, 1]} : vector<1x256xf32> to vector<1x254xf32>
    %37 = tpu.concatenate %35, %36 in 1 : vector<1x2xf32>, vector<1x254xf32> -> vector<1x256xf32>
    %cst_10 = arith.constant 0.000000e+00 : f32
    %38 = vector.broadcast %cst_10 : f32 to vector<1x256xf32>
    %39 = arith.select %29, %37, %38 : vector<1x256xi1>, vector<1x256xf32>
    %c1_i32 = arith.constant 1 : i32
    %40 = vector.broadcast %c1_i32 : i32 to vector<1x256xi32>
    %41 = arith.cmpi sge, %9, %40 : vector<1x256xi32>
    %c17_i32 = arith.constant 17 : i32
    %42 = vector.broadcast %c17_i32 : i32 to vector<1x256xi32>
    %43 = arith.cmpi slt, %9, %42 : vector<1x256xi32>
    %44 = arith.andi %41, %43 : vector<1x256xi1>
    %45 = vector.extract_strided_slice %3 {offsets = [0, 255], sizes = [1, 1], strides = [1, 1]} : vector<1x256xf32> to vector<1x1xf32>
    %46 = vector.extract_strided_slice %3 {offsets = [0, 0], sizes = [1, 255], strides = [1, 1]} : vector<1x256xf32> to vector<1x255xf32>
    %47 = tpu.concatenate %45, %46 in 1 : vector<1x1xf32>, vector<1x255xf32> -> vector<1x256xf32>
    %cst_11 = arith.constant 0.000000e+00 : f32
    %48 = vector.broadcast %cst_11 : f32 to vector<1x256xf32>
    %49 = arith.select %44, %47, %48 : vector<1x256xi1>, vector<1x256xf32>
    %50 = vector.extract_strided_slice %7 {offsets = [0, 255], sizes = [1, 1], strides = [1, 1]} : vector<1x256xf32> to vector<1x1xf32>
    %51 = vector.extract_strided_slice %7 {offsets = [0, 0], sizes = [1, 255], strides = [1, 1]} : vector<1x256xf32> to vector<1x255xf32>
    %52 = tpu.concatenate %50, %51 in 1 : vector<1x1xf32>, vector<1x255xf32> -> vector<1x256xf32>
    %cst_12 = arith.constant 0.000000e+00 : f32
    %53 = vector.broadcast %cst_12 : f32 to vector<1x256xf32>
    %54 = arith.select %44, %52, %53 : vector<1x256xi1>, vector<1x256xf32>
    %c-1_i32 = arith.constant -1 : i32
    %55 = vector.broadcast %c-1_i32 : i32 to vector<1x256xi32>
    %56 = arith.cmpi sge, %9, %55 : vector<1x256xi32>
    %c15_i32 = arith.constant 15 : i32
    %57 = vector.broadcast %c15_i32 : i32 to vector<1x256xi32>
    %58 = arith.cmpi slt, %9, %57 : vector<1x256xi32>
    %59 = arith.andi %56, %58 : vector<1x256xi1>
    %60 = vector.extract_strided_slice %3 {offsets = [0, 1], sizes = [1, 255], strides = [1, 1]} : vector<1x256xf32> to vector<1x255xf32>
    %61 = vector.extract_strided_slice %3 {offsets = [0, 0], sizes = [1, 1], strides = [1, 1]} : vector<1x256xf32> to vector<1x1xf32>
    %62 = tpu.concatenate %60, %61 in 1 : vector<1x255xf32>, vector<1x1xf32> -> vector<1x256xf32>
    %cst_13 = arith.constant 0.000000e+00 : f32
    %63 = vector.broadcast %cst_13 : f32 to vector<1x256xf32>
    %64 = arith.select %59, %62, %63 : vector<1x256xi1>, vector<1x256xf32>
    %65 = vector.extract_strided_slice %7 {offsets = [0, 1], sizes = [1, 255], strides = [1, 1]} : vector<1x256xf32> to vector<1x255xf32>
    %66 = vector.extract_strided_slice %7 {offsets = [0, 0], sizes = [1, 1], strides = [1, 1]} : vector<1x256xf32> to vector<1x1xf32>
    %67 = tpu.concatenate %65, %66 in 1 : vector<1x255xf32>, vector<1x1xf32> -> vector<1x256xf32>
    %cst_14 = arith.constant 0.000000e+00 : f32
    %68 = vector.broadcast %cst_14 : f32 to vector<1x256xf32>
    %69 = arith.select %59, %67, %68 : vector<1x256xi1>, vector<1x256xf32>
    %c-2_i32 = arith.constant -2 : i32
    %70 = vector.broadcast %c-2_i32 : i32 to vector<1x256xi32>
    %71 = arith.cmpi sge, %9, %70 : vector<1x256xi32>
    %c14_i32 = arith.constant 14 : i32
    %72 = vector.broadcast %c14_i32 : i32 to vector<1x256xi32>
    %73 = arith.cmpi slt, %9, %72 : vector<1x256xi32>
    %74 = arith.andi %71, %73 : vector<1x256xi1>
    %75 = vector.extract_strided_slice %3 {offsets = [0, 2], sizes = [1, 254], strides = [1, 1]} : vector<1x256xf32> to vector<1x254xf32>
    %76 = vector.extract_strided_slice %3 {offsets = [0, 0], sizes = [1, 2], strides = [1, 1]} : vector<1x256xf32> to vector<1x2xf32>
    %77 = tpu.concatenate %75, %76 in 1 : vector<1x254xf32>, vector<1x2xf32> -> vector<1x256xf32>
    %cst_15 = arith.constant 0.000000e+00 : f32
    %78 = vector.broadcast %cst_15 : f32 to vector<1x256xf32>
    %79 = arith.select %74, %77, %78 : vector<1x256xi1>, vector<1x256xf32>
    %80 = vector.extract_strided_slice %7 {offsets = [0, 2], sizes = [1, 254], strides = [1, 1]} : vector<1x256xf32> to vector<1x254xf32>
    %81 = vector.extract_strided_slice %7 {offsets = [0, 0], sizes = [1, 2], strides = [1, 1]} : vector<1x256xf32> to vector<1x2xf32>
    %82 = tpu.concatenate %80, %81 in 1 : vector<1x254xf32>, vector<1x2xf32> -> vector<1x256xf32>
    %cst_16 = arith.constant 0.000000e+00 : f32
    %83 = vector.broadcast %cst_16 : f32 to vector<1x256xf32>
    %84 = arith.select %74, %82, %83 : vector<1x256xi1>, vector<1x256xf32>
    %c-3_i32 = arith.constant -3 : i32
    %85 = vector.broadcast %c-3_i32 : i32 to vector<1x256xi32>
    %86 = arith.cmpi sge, %9, %85 : vector<1x256xi32>
    %c13_i32 = arith.constant 13 : i32
    %87 = vector.broadcast %c13_i32 : i32 to vector<1x256xi32>
    %88 = arith.cmpi slt, %9, %87 : vector<1x256xi32>
    %89 = arith.andi %86, %88 : vector<1x256xi1>
    %90 = vector.extract_strided_slice %3 {offsets = [0, 3], sizes = [1, 253], strides = [1, 1]} : vector<1x256xf32> to vector<1x253xf32>
    %91 = vector.extract_strided_slice %3 {offsets = [0, 0], sizes = [1, 3], strides = [1, 1]} : vector<1x256xf32> to vector<1x3xf32>
    %92 = tpu.concatenate %90, %91 in 1 : vector<1x253xf32>, vector<1x3xf32> -> vector<1x256xf32>
    %cst_17 = arith.constant 0.000000e+00 : f32
    %93 = vector.broadcast %cst_17 : f32 to vector<1x256xf32>
    %94 = arith.select %89, %92, %93 : vector<1x256xi1>, vector<1x256xf32>
    %95 = vector.extract_strided_slice %7 {offsets = [0, 3], sizes = [1, 253], strides = [1, 1]} : vector<1x256xf32> to vector<1x253xf32>
    %96 = vector.extract_strided_slice %7 {offsets = [0, 0], sizes = [1, 3], strides = [1, 1]} : vector<1x256xf32> to vector<1x3xf32>
    %97 = tpu.concatenate %95, %96 in 1 : vector<1x253xf32>, vector<1x3xf32> -> vector<1x256xf32>
    %cst_18 = arith.constant 0.000000e+00 : f32
    %98 = vector.broadcast %cst_18 : f32 to vector<1x256xf32>
    %99 = arith.select %89, %97, %98 : vector<1x256xi1>, vector<1x256xf32>
    %cst_19 = arith.constant 0.000000e+00 : f32
    %100 = vector.broadcast %cst_19 : f32 to vector<1x256xf32>
    %cst_20 = arith.constant 0.000000e+00 : f32
    %101 = vector.broadcast %cst_20 : f32 to vector<1x256xf32>
    %c0_21 = arith.constant 0 : index
    %102 = memref.load %arg1[%c0_21] : memref<98xf32, #tpu.memory_space<smem>>
    %c49 = arith.constant 49 : index
    %103 = memref.load %arg1[%c49] : memref<98xf32, #tpu.memory_space<smem>>
    %104 = vector.broadcast %102 : f32 to vector<1x256xf32>
    %105 = arith.mulf %104, %19 : vector<1x256xf32>
    %106 = arith.addf %101, %105 : vector<1x256xf32>
    %107 = vector.broadcast %103 : f32 to vector<1x256xf32>
    %108 = arith.mulf %107, %24 : vector<1x256xf32>
    %109 = arith.addf %106, %108 : vector<1x256xf32>
    %c1_22 = arith.constant 1 : index
    %110 = memref.load %arg1[%c1_22] : memref<98xf32, #tpu.memory_space<smem>>
    %c50 = arith.constant 50 : index
    %111 = memref.load %arg1[%c50] : memref<98xf32, #tpu.memory_space<smem>>
    %112 = vector.broadcast %110 : f32 to vector<1x256xf32>
    %113 = arith.mulf %112, %34 : vector<1x256xf32>
    %114 = arith.addf %109, %113 : vector<1x256xf32>
    %115 = vector.broadcast %111 : f32 to vector<1x256xf32>
    %116 = arith.mulf %115, %39 : vector<1x256xf32>
    %117 = arith.addf %114, %116 : vector<1x256xf32>
    %c2 = arith.constant 2 : index
    %118 = memref.load %arg1[%c2] : memref<98xf32, #tpu.memory_space<smem>>
    %c51 = arith.constant 51 : index
    %119 = memref.load %arg1[%c51] : memref<98xf32, #tpu.memory_space<smem>>
    %120 = vector.broadcast %118 : f32 to vector<1x256xf32>
    %121 = arith.mulf %120, %49 : vector<1x256xf32>
    %122 = arith.addf %117, %121 : vector<1x256xf32>
    %123 = vector.broadcast %119 : f32 to vector<1x256xf32>
    %124 = arith.mulf %123, %54 : vector<1x256xf32>
    %125 = arith.addf %122, %124 : vector<1x256xf32>
    %c3 = arith.constant 3 : index
    %126 = memref.load %arg1[%c3] : memref<98xf32, #tpu.memory_space<smem>>
    %c52 = arith.constant 52 : index
    %127 = memref.load %arg1[%c52] : memref<98xf32, #tpu.memory_space<smem>>
    %128 = vector.broadcast %126 : f32 to vector<1x256xf32>
    %129 = arith.mulf %128, %3 : vector<1x256xf32>
    %130 = arith.addf %125, %129 : vector<1x256xf32>
    %131 = vector.broadcast %127 : f32 to vector<1x256xf32>
    %132 = arith.mulf %131, %7 : vector<1x256xf32>
    %133 = arith.addf %130, %132 : vector<1x256xf32>
    %c4 = arith.constant 4 : index
    %134 = memref.load %arg1[%c4] : memref<98xf32, #tpu.memory_space<smem>>
    %c53 = arith.constant 53 : index
    %135 = memref.load %arg1[%c53] : memref<98xf32, #tpu.memory_space<smem>>
    %136 = vector.broadcast %134 : f32 to vector<1x256xf32>
    %137 = arith.mulf %136, %64 : vector<1x256xf32>
    %138 = arith.addf %133, %137 : vector<1x256xf32>
    %139 = vector.broadcast %135 : f32 to vector<1x256xf32>
    %140 = arith.mulf %139, %69 : vector<1x256xf32>
    %141 = arith.addf %138, %140 : vector<1x256xf32>
    %c5 = arith.constant 5 : index
    %142 = memref.load %arg1[%c5] : memref<98xf32, #tpu.memory_space<smem>>
    %c54 = arith.constant 54 : index
    %143 = memref.load %arg1[%c54] : memref<98xf32, #tpu.memory_space<smem>>
    %144 = vector.broadcast %142 : f32 to vector<1x256xf32>
    %145 = arith.mulf %144, %79 : vector<1x256xf32>
    %146 = arith.addf %141, %145 : vector<1x256xf32>
    %147 = vector.broadcast %143 : f32 to vector<1x256xf32>
    %148 = arith.mulf %147, %84 : vector<1x256xf32>
    %149 = arith.addf %146, %148 : vector<1x256xf32>
    %c6 = arith.constant 6 : index
    %150 = memref.load %arg1[%c6] : memref<98xf32, #tpu.memory_space<smem>>
    %c55 = arith.constant 55 : index
    %151 = memref.load %arg1[%c55] : memref<98xf32, #tpu.memory_space<smem>>
    %152 = vector.broadcast %150 : f32 to vector<1x256xf32>
    %153 = arith.mulf %152, %94 : vector<1x256xf32>
    %154 = arith.addf %149, %153 : vector<1x256xf32>
    %155 = vector.broadcast %151 : f32 to vector<1x256xf32>
    %156 = arith.mulf %155, %99 : vector<1x256xf32>
    %157 = arith.addf %154, %156 : vector<1x256xf32>
    %c3_i32_23 = arith.constant 3 : i32
    %158 = vector.broadcast %c3_i32_23 : i32 to vector<1x256xi32>
    %159 = arith.cmpi sge, %8, %158 : vector<1x256xi32>
    %c19_i32_24 = arith.constant 19 : i32
    %160 = vector.broadcast %c19_i32_24 : i32 to vector<1x256xi32>
    %161 = arith.cmpi slt, %8, %160 : vector<1x256xi32>
    %162 = arith.andi %159, %161 : vector<1x256xi1>
    %163 = vector.extract_strided_slice %157 {offsets = [0, 208], sizes = [1, 48], strides = [1, 1]} : vector<1x256xf32> to vector<1x48xf32>
    %164 = vector.extract_strided_slice %157 {offsets = [0, 0], sizes = [1, 208], strides = [1, 1]} : vector<1x256xf32> to vector<1x208xf32>
    %165 = tpu.concatenate %163, %164 in 1 : vector<1x48xf32>, vector<1x208xf32> -> vector<1x256xf32>
    %cst_25 = arith.constant 0.000000e+00 : f32
    %166 = vector.broadcast %cst_25 : f32 to vector<1x256xf32>
    %167 = arith.select %162, %165, %166 : vector<1x256xi1>, vector<1x256xf32>
    %168 = arith.addf %100, %167 : vector<1x256xf32>
    %cst_26 = arith.constant 0.000000e+00 : f32
    %169 = vector.broadcast %cst_26 : f32 to vector<1x256xf32>
    %c7 = arith.constant 7 : index
    %170 = memref.load %arg1[%c7] : memref<98xf32, #tpu.memory_space<smem>>
    %c56 = arith.constant 56 : index
    %171 = memref.load %arg1[%c56] : memref<98xf32, #tpu.memory_space<smem>>
    %172 = vector.broadcast %170 : f32 to vector<1x256xf32>
    %173 = arith.mulf %172, %19 : vector<1x256xf32>
    %174 = arith.addf %169, %173 : vector<1x256xf32>
    %175 = vector.broadcast %171 : f32 to vector<1x256xf32>
    %176 = arith.mulf %175, %24 : vector<1x256xf32>
    %177 = arith.addf %174, %176 : vector<1x256xf32>
    %c8 = arith.constant 8 : index
    %178 = memref.load %arg1[%c8] : memref<98xf32, #tpu.memory_space<smem>>
    %c57 = arith.constant 57 : index
    %179 = memref.load %arg1[%c57] : memref<98xf32, #tpu.memory_space<smem>>
    %180 = vector.broadcast %178 : f32 to vector<1x256xf32>
    %181 = arith.mulf %180, %34 : vector<1x256xf32>
    %182 = arith.addf %177, %181 : vector<1x256xf32>
    %183 = vector.broadcast %179 : f32 to vector<1x256xf32>
    %184 = arith.mulf %183, %39 : vector<1x256xf32>
    %185 = arith.addf %182, %184 : vector<1x256xf32>
    %c9 = arith.constant 9 : index
    %186 = memref.load %arg1[%c9] : memref<98xf32, #tpu.memory_space<smem>>
    %c58 = arith.constant 58 : index
    %187 = memref.load %arg1[%c58] : memref<98xf32, #tpu.memory_space<smem>>
    %188 = vector.broadcast %186 : f32 to vector<1x256xf32>
    %189 = arith.mulf %188, %49 : vector<1x256xf32>
    %190 = arith.addf %185, %189 : vector<1x256xf32>
    %191 = vector.broadcast %187 : f32 to vector<1x256xf32>
    %192 = arith.mulf %191, %54 : vector<1x256xf32>
    %193 = arith.addf %190, %192 : vector<1x256xf32>
    %c10 = arith.constant 10 : index
    %194 = memref.load %arg1[%c10] : memref<98xf32, #tpu.memory_space<smem>>
    %c59 = arith.constant 59 : index
    %195 = memref.load %arg1[%c59] : memref<98xf32, #tpu.memory_space<smem>>
    %196 = vector.broadcast %194 : f32 to vector<1x256xf32>
    %197 = arith.mulf %196, %3 : vector<1x256xf32>
    %198 = arith.addf %193, %197 : vector<1x256xf32>
    %199 = vector.broadcast %195 : f32 to vector<1x256xf32>
    %200 = arith.mulf %199, %7 : vector<1x256xf32>
    %201 = arith.addf %198, %200 : vector<1x256xf32>
    %c11 = arith.constant 11 : index
    %202 = memref.load %arg1[%c11] : memref<98xf32, #tpu.memory_space<smem>>
    %c60 = arith.constant 60 : index
    %203 = memref.load %arg1[%c60] : memref<98xf32, #tpu.memory_space<smem>>
    %204 = vector.broadcast %202 : f32 to vector<1x256xf32>
    %205 = arith.mulf %204, %64 : vector<1x256xf32>
    %206 = arith.addf %201, %205 : vector<1x256xf32>
    %207 = vector.broadcast %203 : f32 to vector<1x256xf32>
    %208 = arith.mulf %207, %69 : vector<1x256xf32>
    %209 = arith.addf %206, %208 : vector<1x256xf32>
    %c12 = arith.constant 12 : index
    %210 = memref.load %arg1[%c12] : memref<98xf32, #tpu.memory_space<smem>>
    %c61 = arith.constant 61 : index
    %211 = memref.load %arg1[%c61] : memref<98xf32, #tpu.memory_space<smem>>
    %212 = vector.broadcast %210 : f32 to vector<1x256xf32>
    %213 = arith.mulf %212, %79 : vector<1x256xf32>
    %214 = arith.addf %209, %213 : vector<1x256xf32>
    %215 = vector.broadcast %211 : f32 to vector<1x256xf32>
    %216 = arith.mulf %215, %84 : vector<1x256xf32>
    %217 = arith.addf %214, %216 : vector<1x256xf32>
    %c13 = arith.constant 13 : index
    %218 = memref.load %arg1[%c13] : memref<98xf32, #tpu.memory_space<smem>>
    %c62 = arith.constant 62 : index
    %219 = memref.load %arg1[%c62] : memref<98xf32, #tpu.memory_space<smem>>
    %220 = vector.broadcast %218 : f32 to vector<1x256xf32>
    %221 = arith.mulf %220, %94 : vector<1x256xf32>
    %222 = arith.addf %217, %221 : vector<1x256xf32>
    %223 = vector.broadcast %219 : f32 to vector<1x256xf32>
    %224 = arith.mulf %223, %99 : vector<1x256xf32>
    %225 = arith.addf %222, %224 : vector<1x256xf32>
    %c2_i32_27 = arith.constant 2 : i32
    %226 = vector.broadcast %c2_i32_27 : i32 to vector<1x256xi32>
    %227 = arith.cmpi sge, %8, %226 : vector<1x256xi32>
    %c18_i32_28 = arith.constant 18 : i32
    %228 = vector.broadcast %c18_i32_28 : i32 to vector<1x256xi32>
    %229 = arith.cmpi slt, %8, %228 : vector<1x256xi32>
    %230 = arith.andi %227, %229 : vector<1x256xi1>
    %231 = vector.extract_strided_slice %225 {offsets = [0, 224], sizes = [1, 32], strides = [1, 1]} : vector<1x256xf32> to vector<1x32xf32>
    %232 = vector.extract_strided_slice %225 {offsets = [0, 0], sizes = [1, 224], strides = [1, 1]} : vector<1x256xf32> to vector<1x224xf32>
    %233 = tpu.concatenate %231, %232 in 1 : vector<1x32xf32>, vector<1x224xf32> -> vector<1x256xf32>
    %cst_29 = arith.constant 0.000000e+00 : f32
    %234 = vector.broadcast %cst_29 : f32 to vector<1x256xf32>
    %235 = arith.select %230, %233, %234 : vector<1x256xi1>, vector<1x256xf32>
    %236 = arith.addf %168, %235 : vector<1x256xf32>
    %cst_30 = arith.constant 0.000000e+00 : f32
    %237 = vector.broadcast %cst_30 : f32 to vector<1x256xf32>
    %c14 = arith.constant 14 : index
    %238 = memref.load %arg1[%c14] : memref<98xf32, #tpu.memory_space<smem>>
    %c63 = arith.constant 63 : index
    %239 = memref.load %arg1[%c63] : memref<98xf32, #tpu.memory_space<smem>>
    %240 = vector.broadcast %238 : f32 to vector<1x256xf32>
    %241 = arith.mulf %240, %19 : vector<1x256xf32>
    %242 = arith.addf %237, %241 : vector<1x256xf32>
    %243 = vector.broadcast %239 : f32 to vector<1x256xf32>
    %244 = arith.mulf %243, %24 : vector<1x256xf32>
    %245 = arith.addf %242, %244 : vector<1x256xf32>
    %c15 = arith.constant 15 : index
    %246 = memref.load %arg1[%c15] : memref<98xf32, #tpu.memory_space<smem>>
    %c64 = arith.constant 64 : index
    %247 = memref.load %arg1[%c64] : memref<98xf32, #tpu.memory_space<smem>>
    %248 = vector.broadcast %246 : f32 to vector<1x256xf32>
    %249 = arith.mulf %248, %34 : vector<1x256xf32>
    %250 = arith.addf %245, %249 : vector<1x256xf32>
    %251 = vector.broadcast %247 : f32 to vector<1x256xf32>
    %252 = arith.mulf %251, %39 : vector<1x256xf32>
    %253 = arith.addf %250, %252 : vector<1x256xf32>
    %c16 = arith.constant 16 : index
    %254 = memref.load %arg1[%c16] : memref<98xf32, #tpu.memory_space<smem>>
    %c65 = arith.constant 65 : index
    %255 = memref.load %arg1[%c65] : memref<98xf32, #tpu.memory_space<smem>>
    %256 = vector.broadcast %254 : f32 to vector<1x256xf32>
    %257 = arith.mulf %256, %49 : vector<1x256xf32>
    %258 = arith.addf %253, %257 : vector<1x256xf32>
    %259 = vector.broadcast %255 : f32 to vector<1x256xf32>
    %260 = arith.mulf %259, %54 : vector<1x256xf32>
    %261 = arith.addf %258, %260 : vector<1x256xf32>
    %c17 = arith.constant 17 : index
    %262 = memref.load %arg1[%c17] : memref<98xf32, #tpu.memory_space<smem>>
    %c66 = arith.constant 66 : index
    %263 = memref.load %arg1[%c66] : memref<98xf32, #tpu.memory_space<smem>>
    %264 = vector.broadcast %262 : f32 to vector<1x256xf32>
    %265 = arith.mulf %264, %3 : vector<1x256xf32>
    %266 = arith.addf %261, %265 : vector<1x256xf32>
    %267 = vector.broadcast %263 : f32 to vector<1x256xf32>
    %268 = arith.mulf %267, %7 : vector<1x256xf32>
    %269 = arith.addf %266, %268 : vector<1x256xf32>
    %c18 = arith.constant 18 : index
    %270 = memref.load %arg1[%c18] : memref<98xf32, #tpu.memory_space<smem>>
    %c67 = arith.constant 67 : index
    %271 = memref.load %arg1[%c67] : memref<98xf32, #tpu.memory_space<smem>>
    %272 = vector.broadcast %270 : f32 to vector<1x256xf32>
    %273 = arith.mulf %272, %64 : vector<1x256xf32>
    %274 = arith.addf %269, %273 : vector<1x256xf32>
    %275 = vector.broadcast %271 : f32 to vector<1x256xf32>
    %276 = arith.mulf %275, %69 : vector<1x256xf32>
    %277 = arith.addf %274, %276 : vector<1x256xf32>
    %c19 = arith.constant 19 : index
    %278 = memref.load %arg1[%c19] : memref<98xf32, #tpu.memory_space<smem>>
    %c68 = arith.constant 68 : index
    %279 = memref.load %arg1[%c68] : memref<98xf32, #tpu.memory_space<smem>>
    %280 = vector.broadcast %278 : f32 to vector<1x256xf32>
    %281 = arith.mulf %280, %79 : vector<1x256xf32>
    %282 = arith.addf %277, %281 : vector<1x256xf32>
    %283 = vector.broadcast %279 : f32 to vector<1x256xf32>
    %284 = arith.mulf %283, %84 : vector<1x256xf32>
    %285 = arith.addf %282, %284 : vector<1x256xf32>
    %c20 = arith.constant 20 : index
    %286 = memref.load %arg1[%c20] : memref<98xf32, #tpu.memory_space<smem>>
    %c69 = arith.constant 69 : index
    %287 = memref.load %arg1[%c69] : memref<98xf32, #tpu.memory_space<smem>>
    %288 = vector.broadcast %286 : f32 to vector<1x256xf32>
    %289 = arith.mulf %288, %94 : vector<1x256xf32>
    %290 = arith.addf %285, %289 : vector<1x256xf32>
    %291 = vector.broadcast %287 : f32 to vector<1x256xf32>
    %292 = arith.mulf %291, %99 : vector<1x256xf32>
    %293 = arith.addf %290, %292 : vector<1x256xf32>
    %c1_i32_31 = arith.constant 1 : i32
    %294 = vector.broadcast %c1_i32_31 : i32 to vector<1x256xi32>
    %295 = arith.cmpi sge, %8, %294 : vector<1x256xi32>
    %c17_i32_32 = arith.constant 17 : i32
    %296 = vector.broadcast %c17_i32_32 : i32 to vector<1x256xi32>
    %297 = arith.cmpi slt, %8, %296 : vector<1x256xi32>
    %298 = arith.andi %295, %297 : vector<1x256xi1>
    %299 = vector.extract_strided_slice %293 {offsets = [0, 240], sizes = [1, 16], strides = [1, 1]} : vector<1x256xf32> to vector<1x16xf32>
    %300 = vector.extract_strided_slice %293 {offsets = [0, 0], sizes = [1, 240], strides = [1, 1]} : vector<1x256xf32> to vector<1x240xf32>
    %301 = tpu.concatenate %299, %300 in 1 : vector<1x16xf32>, vector<1x240xf32> -> vector<1x256xf32>
    %cst_33 = arith.constant 0.000000e+00 : f32
    %302 = vector.broadcast %cst_33 : f32 to vector<1x256xf32>
    %303 = arith.select %298, %301, %302 : vector<1x256xi1>, vector<1x256xf32>
    %304 = arith.addf %236, %303 : vector<1x256xf32>
    %cst_34 = arith.constant 0.000000e+00 : f32
    %305 = vector.broadcast %cst_34 : f32 to vector<1x256xf32>
    %c21 = arith.constant 21 : index
    %306 = memref.load %arg1[%c21] : memref<98xf32, #tpu.memory_space<smem>>
    %c70 = arith.constant 70 : index
    %307 = memref.load %arg1[%c70] : memref<98xf32, #tpu.memory_space<smem>>
    %308 = vector.broadcast %306 : f32 to vector<1x256xf32>
    %309 = arith.mulf %308, %19 : vector<1x256xf32>
    %310 = arith.addf %305, %309 : vector<1x256xf32>
    %311 = vector.broadcast %307 : f32 to vector<1x256xf32>
    %312 = arith.mulf %311, %24 : vector<1x256xf32>
    %313 = arith.addf %310, %312 : vector<1x256xf32>
    %c22 = arith.constant 22 : index
    %314 = memref.load %arg1[%c22] : memref<98xf32, #tpu.memory_space<smem>>
    %c71 = arith.constant 71 : index
    %315 = memref.load %arg1[%c71] : memref<98xf32, #tpu.memory_space<smem>>
    %316 = vector.broadcast %314 : f32 to vector<1x256xf32>
    %317 = arith.mulf %316, %34 : vector<1x256xf32>
    %318 = arith.addf %313, %317 : vector<1x256xf32>
    %319 = vector.broadcast %315 : f32 to vector<1x256xf32>
    %320 = arith.mulf %319, %39 : vector<1x256xf32>
    %321 = arith.addf %318, %320 : vector<1x256xf32>
    %c23 = arith.constant 23 : index
    %322 = memref.load %arg1[%c23] : memref<98xf32, #tpu.memory_space<smem>>
    %c72 = arith.constant 72 : index
    %323 = memref.load %arg1[%c72] : memref<98xf32, #tpu.memory_space<smem>>
    %324 = vector.broadcast %322 : f32 to vector<1x256xf32>
    %325 = arith.mulf %324, %49 : vector<1x256xf32>
    %326 = arith.addf %321, %325 : vector<1x256xf32>
    %327 = vector.broadcast %323 : f32 to vector<1x256xf32>
    %328 = arith.mulf %327, %54 : vector<1x256xf32>
    %329 = arith.addf %326, %328 : vector<1x256xf32>
    %c24 = arith.constant 24 : index
    %330 = memref.load %arg1[%c24] : memref<98xf32, #tpu.memory_space<smem>>
    %c73 = arith.constant 73 : index
    %331 = memref.load %arg1[%c73] : memref<98xf32, #tpu.memory_space<smem>>
    %332 = vector.broadcast %330 : f32 to vector<1x256xf32>
    %333 = arith.mulf %332, %3 : vector<1x256xf32>
    %334 = arith.addf %329, %333 : vector<1x256xf32>
    %335 = vector.broadcast %331 : f32 to vector<1x256xf32>
    %336 = arith.mulf %335, %7 : vector<1x256xf32>
    %337 = arith.addf %334, %336 : vector<1x256xf32>
    %c25 = arith.constant 25 : index
    %338 = memref.load %arg1[%c25] : memref<98xf32, #tpu.memory_space<smem>>
    %c74 = arith.constant 74 : index
    %339 = memref.load %arg1[%c74] : memref<98xf32, #tpu.memory_space<smem>>
    %340 = vector.broadcast %338 : f32 to vector<1x256xf32>
    %341 = arith.mulf %340, %64 : vector<1x256xf32>
    %342 = arith.addf %337, %341 : vector<1x256xf32>
    %343 = vector.broadcast %339 : f32 to vector<1x256xf32>
    %344 = arith.mulf %343, %69 : vector<1x256xf32>
    %345 = arith.addf %342, %344 : vector<1x256xf32>
    %c26 = arith.constant 26 : index
    %346 = memref.load %arg1[%c26] : memref<98xf32, #tpu.memory_space<smem>>
    %c75 = arith.constant 75 : index
    %347 = memref.load %arg1[%c75] : memref<98xf32, #tpu.memory_space<smem>>
    %348 = vector.broadcast %346 : f32 to vector<1x256xf32>
    %349 = arith.mulf %348, %79 : vector<1x256xf32>
    %350 = arith.addf %345, %349 : vector<1x256xf32>
    %351 = vector.broadcast %347 : f32 to vector<1x256xf32>
    %352 = arith.mulf %351, %84 : vector<1x256xf32>
    %353 = arith.addf %350, %352 : vector<1x256xf32>
    %c27 = arith.constant 27 : index
    %354 = memref.load %arg1[%c27] : memref<98xf32, #tpu.memory_space<smem>>
    %c76 = arith.constant 76 : index
    %355 = memref.load %arg1[%c76] : memref<98xf32, #tpu.memory_space<smem>>
    %356 = vector.broadcast %354 : f32 to vector<1x256xf32>
    %357 = arith.mulf %356, %94 : vector<1x256xf32>
    %358 = arith.addf %353, %357 : vector<1x256xf32>
    %359 = vector.broadcast %355 : f32 to vector<1x256xf32>
    %360 = arith.mulf %359, %99 : vector<1x256xf32>
    %361 = arith.addf %358, %360 : vector<1x256xf32>
    %362 = arith.addf %304, %361 : vector<1x256xf32>
    %cst_35 = arith.constant 0.000000e+00 : f32
    %363 = vector.broadcast %cst_35 : f32 to vector<1x256xf32>
    %c28 = arith.constant 28 : index
    %364 = memref.load %arg1[%c28] : memref<98xf32, #tpu.memory_space<smem>>
    %c77 = arith.constant 77 : index
    %365 = memref.load %arg1[%c77] : memref<98xf32, #tpu.memory_space<smem>>
    %366 = vector.broadcast %364 : f32 to vector<1x256xf32>
    %367 = arith.mulf %366, %19 : vector<1x256xf32>
    %368 = arith.addf %363, %367 : vector<1x256xf32>
    %369 = vector.broadcast %365 : f32 to vector<1x256xf32>
    %370 = arith.mulf %369, %24 : vector<1x256xf32>
    %371 = arith.addf %368, %370 : vector<1x256xf32>
    %c29 = arith.constant 29 : index
    %372 = memref.load %arg1[%c29] : memref<98xf32, #tpu.memory_space<smem>>
    %c78 = arith.constant 78 : index
    %373 = memref.load %arg1[%c78] : memref<98xf32, #tpu.memory_space<smem>>
    %374 = vector.broadcast %372 : f32 to vector<1x256xf32>
    %375 = arith.mulf %374, %34 : vector<1x256xf32>
    %376 = arith.addf %371, %375 : vector<1x256xf32>
    %377 = vector.broadcast %373 : f32 to vector<1x256xf32>
    %378 = arith.mulf %377, %39 : vector<1x256xf32>
    %379 = arith.addf %376, %378 : vector<1x256xf32>
    %c30 = arith.constant 30 : index
    %380 = memref.load %arg1[%c30] : memref<98xf32, #tpu.memory_space<smem>>
    %c79 = arith.constant 79 : index
    %381 = memref.load %arg1[%c79] : memref<98xf32, #tpu.memory_space<smem>>
    %382 = vector.broadcast %380 : f32 to vector<1x256xf32>
    %383 = arith.mulf %382, %49 : vector<1x256xf32>
    %384 = arith.addf %379, %383 : vector<1x256xf32>
    %385 = vector.broadcast %381 : f32 to vector<1x256xf32>
    %386 = arith.mulf %385, %54 : vector<1x256xf32>
    %387 = arith.addf %384, %386 : vector<1x256xf32>
    %c31 = arith.constant 31 : index
    %388 = memref.load %arg1[%c31] : memref<98xf32, #tpu.memory_space<smem>>
    %c80 = arith.constant 80 : index
    %389 = memref.load %arg1[%c80] : memref<98xf32, #tpu.memory_space<smem>>
    %390 = vector.broadcast %388 : f32 to vector<1x256xf32>
    %391 = arith.mulf %390, %3 : vector<1x256xf32>
    %392 = arith.addf %387, %391 : vector<1x256xf32>
    %393 = vector.broadcast %389 : f32 to vector<1x256xf32>
    %394 = arith.mulf %393, %7 : vector<1x256xf32>
    %395 = arith.addf %392, %394 : vector<1x256xf32>
    %c32 = arith.constant 32 : index
    %396 = memref.load %arg1[%c32] : memref<98xf32, #tpu.memory_space<smem>>
    %c81 = arith.constant 81 : index
    %397 = memref.load %arg1[%c81] : memref<98xf32, #tpu.memory_space<smem>>
    %398 = vector.broadcast %396 : f32 to vector<1x256xf32>
    %399 = arith.mulf %398, %64 : vector<1x256xf32>
    %400 = arith.addf %395, %399 : vector<1x256xf32>
    %401 = vector.broadcast %397 : f32 to vector<1x256xf32>
    %402 = arith.mulf %401, %69 : vector<1x256xf32>
    %403 = arith.addf %400, %402 : vector<1x256xf32>
    %c33 = arith.constant 33 : index
    %404 = memref.load %arg1[%c33] : memref<98xf32, #tpu.memory_space<smem>>
    %c82 = arith.constant 82 : index
    %405 = memref.load %arg1[%c82] : memref<98xf32, #tpu.memory_space<smem>>
    %406 = vector.broadcast %404 : f32 to vector<1x256xf32>
    %407 = arith.mulf %406, %79 : vector<1x256xf32>
    %408 = arith.addf %403, %407 : vector<1x256xf32>
    %409 = vector.broadcast %405 : f32 to vector<1x256xf32>
    %410 = arith.mulf %409, %84 : vector<1x256xf32>
    %411 = arith.addf %408, %410 : vector<1x256xf32>
    %c34 = arith.constant 34 : index
    %412 = memref.load %arg1[%c34] : memref<98xf32, #tpu.memory_space<smem>>
    %c83 = arith.constant 83 : index
    %413 = memref.load %arg1[%c83] : memref<98xf32, #tpu.memory_space<smem>>
    %414 = vector.broadcast %412 : f32 to vector<1x256xf32>
    %415 = arith.mulf %414, %94 : vector<1x256xf32>
    %416 = arith.addf %411, %415 : vector<1x256xf32>
    %417 = vector.broadcast %413 : f32 to vector<1x256xf32>
    %418 = arith.mulf %417, %99 : vector<1x256xf32>
    %419 = arith.addf %416, %418 : vector<1x256xf32>
    %c-1_i32_36 = arith.constant -1 : i32
    %420 = vector.broadcast %c-1_i32_36 : i32 to vector<1x256xi32>
    %421 = arith.cmpi sge, %8, %420 : vector<1x256xi32>
    %c15_i32_37 = arith.constant 15 : i32
    %422 = vector.broadcast %c15_i32_37 : i32 to vector<1x256xi32>
    %423 = arith.cmpi slt, %8, %422 : vector<1x256xi32>
    %424 = arith.andi %421, %423 : vector<1x256xi1>
    %425 = vector.extract_strided_slice %419 {offsets = [0, 16], sizes = [1, 240], strides = [1, 1]} : vector<1x256xf32> to vector<1x240xf32>
    %426 = vector.extract_strided_slice %419 {offsets = [0, 0], sizes = [1, 16], strides = [1, 1]} : vector<1x256xf32> to vector<1x16xf32>
    %427 = tpu.concatenate %425, %426 in 1 : vector<1x240xf32>, vector<1x16xf32> -> vector<1x256xf32>
    %cst_38 = arith.constant 0.000000e+00 : f32
    %428 = vector.broadcast %cst_38 : f32 to vector<1x256xf32>
    %429 = arith.select %424, %427, %428 : vector<1x256xi1>, vector<1x256xf32>
    %430 = arith.addf %362, %429 : vector<1x256xf32>
    %cst_39 = arith.constant 0.000000e+00 : f32
    %431 = vector.broadcast %cst_39 : f32 to vector<1x256xf32>
    %c35 = arith.constant 35 : index
    %432 = memref.load %arg1[%c35] : memref<98xf32, #tpu.memory_space<smem>>
    %c84 = arith.constant 84 : index
    %433 = memref.load %arg1[%c84] : memref<98xf32, #tpu.memory_space<smem>>
    %434 = vector.broadcast %432 : f32 to vector<1x256xf32>
    %435 = arith.mulf %434, %19 : vector<1x256xf32>
    %436 = arith.addf %431, %435 : vector<1x256xf32>
    %437 = vector.broadcast %433 : f32 to vector<1x256xf32>
    %438 = arith.mulf %437, %24 : vector<1x256xf32>
    %439 = arith.addf %436, %438 : vector<1x256xf32>
    %c36 = arith.constant 36 : index
    %440 = memref.load %arg1[%c36] : memref<98xf32, #tpu.memory_space<smem>>
    %c85 = arith.constant 85 : index
    %441 = memref.load %arg1[%c85] : memref<98xf32, #tpu.memory_space<smem>>
    %442 = vector.broadcast %440 : f32 to vector<1x256xf32>
    %443 = arith.mulf %442, %34 : vector<1x256xf32>
    %444 = arith.addf %439, %443 : vector<1x256xf32>
    %445 = vector.broadcast %441 : f32 to vector<1x256xf32>
    %446 = arith.mulf %445, %39 : vector<1x256xf32>
    %447 = arith.addf %444, %446 : vector<1x256xf32>
    %c37 = arith.constant 37 : index
    %448 = memref.load %arg1[%c37] : memref<98xf32, #tpu.memory_space<smem>>
    %c86 = arith.constant 86 : index
    %449 = memref.load %arg1[%c86] : memref<98xf32, #tpu.memory_space<smem>>
    %450 = vector.broadcast %448 : f32 to vector<1x256xf32>
    %451 = arith.mulf %450, %49 : vector<1x256xf32>
    %452 = arith.addf %447, %451 : vector<1x256xf32>
    %453 = vector.broadcast %449 : f32 to vector<1x256xf32>
    %454 = arith.mulf %453, %54 : vector<1x256xf32>
    %455 = arith.addf %452, %454 : vector<1x256xf32>
    %c38 = arith.constant 38 : index
    %456 = memref.load %arg1[%c38] : memref<98xf32, #tpu.memory_space<smem>>
    %c87 = arith.constant 87 : index
    %457 = memref.load %arg1[%c87] : memref<98xf32, #tpu.memory_space<smem>>
    %458 = vector.broadcast %456 : f32 to vector<1x256xf32>
    %459 = arith.mulf %458, %3 : vector<1x256xf32>
    %460 = arith.addf %455, %459 : vector<1x256xf32>
    %461 = vector.broadcast %457 : f32 to vector<1x256xf32>
    %462 = arith.mulf %461, %7 : vector<1x256xf32>
    %463 = arith.addf %460, %462 : vector<1x256xf32>
    %c39 = arith.constant 39 : index
    %464 = memref.load %arg1[%c39] : memref<98xf32, #tpu.memory_space<smem>>
    %c88 = arith.constant 88 : index
    %465 = memref.load %arg1[%c88] : memref<98xf32, #tpu.memory_space<smem>>
    %466 = vector.broadcast %464 : f32 to vector<1x256xf32>
    %467 = arith.mulf %466, %64 : vector<1x256xf32>
    %468 = arith.addf %463, %467 : vector<1x256xf32>
    %469 = vector.broadcast %465 : f32 to vector<1x256xf32>
    %470 = arith.mulf %469, %69 : vector<1x256xf32>
    %471 = arith.addf %468, %470 : vector<1x256xf32>
    %c40 = arith.constant 40 : index
    %472 = memref.load %arg1[%c40] : memref<98xf32, #tpu.memory_space<smem>>
    %c89 = arith.constant 89 : index
    %473 = memref.load %arg1[%c89] : memref<98xf32, #tpu.memory_space<smem>>
    %474 = vector.broadcast %472 : f32 to vector<1x256xf32>
    %475 = arith.mulf %474, %79 : vector<1x256xf32>
    %476 = arith.addf %471, %475 : vector<1x256xf32>
    %477 = vector.broadcast %473 : f32 to vector<1x256xf32>
    %478 = arith.mulf %477, %84 : vector<1x256xf32>
    %479 = arith.addf %476, %478 : vector<1x256xf32>
    %c41 = arith.constant 41 : index
    %480 = memref.load %arg1[%c41] : memref<98xf32, #tpu.memory_space<smem>>
    %c90 = arith.constant 90 : index
    %481 = memref.load %arg1[%c90] : memref<98xf32, #tpu.memory_space<smem>>
    %482 = vector.broadcast %480 : f32 to vector<1x256xf32>
    %483 = arith.mulf %482, %94 : vector<1x256xf32>
    %484 = arith.addf %479, %483 : vector<1x256xf32>
    %485 = vector.broadcast %481 : f32 to vector<1x256xf32>
    %486 = arith.mulf %485, %99 : vector<1x256xf32>
    %487 = arith.addf %484, %486 : vector<1x256xf32>
    %c-2_i32_40 = arith.constant -2 : i32
    %488 = vector.broadcast %c-2_i32_40 : i32 to vector<1x256xi32>
    %489 = arith.cmpi sge, %8, %488 : vector<1x256xi32>
    %c14_i32_41 = arith.constant 14 : i32
    %490 = vector.broadcast %c14_i32_41 : i32 to vector<1x256xi32>
    %491 = arith.cmpi slt, %8, %490 : vector<1x256xi32>
    %492 = arith.andi %489, %491 : vector<1x256xi1>
    %493 = vector.extract_strided_slice %487 {offsets = [0, 32], sizes = [1, 224], strides = [1, 1]} : vector<1x256xf32> to vector<1x224xf32>
    %494 = vector.extract_strided_slice %487 {offsets = [0, 0], sizes = [1, 32], strides = [1, 1]} : vector<1x256xf32> to vector<1x32xf32>
    %495 = tpu.concatenate %493, %494 in 1 : vector<1x224xf32>, vector<1x32xf32> -> vector<1x256xf32>
    %cst_42 = arith.constant 0.000000e+00 : f32
    %496 = vector.broadcast %cst_42 : f32 to vector<1x256xf32>
    %497 = arith.select %492, %495, %496 : vector<1x256xi1>, vector<1x256xf32>
    %498 = arith.addf %430, %497 : vector<1x256xf32>
    %cst_43 = arith.constant 0.000000e+00 : f32
    %499 = vector.broadcast %cst_43 : f32 to vector<1x256xf32>
    %c42 = arith.constant 42 : index
    %500 = memref.load %arg1[%c42] : memref<98xf32, #tpu.memory_space<smem>>
    %c91 = arith.constant 91 : index
    %501 = memref.load %arg1[%c91] : memref<98xf32, #tpu.memory_space<smem>>
    %502 = vector.broadcast %500 : f32 to vector<1x256xf32>
    %503 = arith.mulf %502, %19 : vector<1x256xf32>
    %504 = arith.addf %499, %503 : vector<1x256xf32>
    %505 = vector.broadcast %501 : f32 to vector<1x256xf32>
    %506 = arith.mulf %505, %24 : vector<1x256xf32>
    %507 = arith.addf %504, %506 : vector<1x256xf32>
    %c43 = arith.constant 43 : index
    %508 = memref.load %arg1[%c43] : memref<98xf32, #tpu.memory_space<smem>>
    %c92 = arith.constant 92 : index
    %509 = memref.load %arg1[%c92] : memref<98xf32, #tpu.memory_space<smem>>
    %510 = vector.broadcast %508 : f32 to vector<1x256xf32>
    %511 = arith.mulf %510, %34 : vector<1x256xf32>
    %512 = arith.addf %507, %511 : vector<1x256xf32>
    %513 = vector.broadcast %509 : f32 to vector<1x256xf32>
    %514 = arith.mulf %513, %39 : vector<1x256xf32>
    %515 = arith.addf %512, %514 : vector<1x256xf32>
    %c44 = arith.constant 44 : index
    %516 = memref.load %arg1[%c44] : memref<98xf32, #tpu.memory_space<smem>>
    %c93 = arith.constant 93 : index
    %517 = memref.load %arg1[%c93] : memref<98xf32, #tpu.memory_space<smem>>
    %518 = vector.broadcast %516 : f32 to vector<1x256xf32>
    %519 = arith.mulf %518, %49 : vector<1x256xf32>
    %520 = arith.addf %515, %519 : vector<1x256xf32>
    %521 = vector.broadcast %517 : f32 to vector<1x256xf32>
    %522 = arith.mulf %521, %54 : vector<1x256xf32>
    %523 = arith.addf %520, %522 : vector<1x256xf32>
    %c45 = arith.constant 45 : index
    %524 = memref.load %arg1[%c45] : memref<98xf32, #tpu.memory_space<smem>>
    %c94 = arith.constant 94 : index
    %525 = memref.load %arg1[%c94] : memref<98xf32, #tpu.memory_space<smem>>
    %526 = vector.broadcast %524 : f32 to vector<1x256xf32>
    %527 = arith.mulf %526, %3 : vector<1x256xf32>
    %528 = arith.addf %523, %527 : vector<1x256xf32>
    %529 = vector.broadcast %525 : f32 to vector<1x256xf32>
    %530 = arith.mulf %529, %7 : vector<1x256xf32>
    %531 = arith.addf %528, %530 : vector<1x256xf32>
    %c46 = arith.constant 46 : index
    %532 = memref.load %arg1[%c46] : memref<98xf32, #tpu.memory_space<smem>>
    %c95 = arith.constant 95 : index
    %533 = memref.load %arg1[%c95] : memref<98xf32, #tpu.memory_space<smem>>
    %534 = vector.broadcast %532 : f32 to vector<1x256xf32>
    %535 = arith.mulf %534, %64 : vector<1x256xf32>
    %536 = arith.addf %531, %535 : vector<1x256xf32>
    %537 = vector.broadcast %533 : f32 to vector<1x256xf32>
    %538 = arith.mulf %537, %69 : vector<1x256xf32>
    %539 = arith.addf %536, %538 : vector<1x256xf32>
    %c47 = arith.constant 47 : index
    %540 = memref.load %arg1[%c47] : memref<98xf32, #tpu.memory_space<smem>>
    %c96 = arith.constant 96 : index
    %541 = memref.load %arg1[%c96] : memref<98xf32, #tpu.memory_space<smem>>
    %542 = vector.broadcast %540 : f32 to vector<1x256xf32>
    %543 = arith.mulf %542, %79 : vector<1x256xf32>
    %544 = arith.addf %539, %543 : vector<1x256xf32>
    %545 = vector.broadcast %541 : f32 to vector<1x256xf32>
    %546 = arith.mulf %545, %84 : vector<1x256xf32>
    %547 = arith.addf %544, %546 : vector<1x256xf32>
    %c48 = arith.constant 48 : index
    %548 = memref.load %arg1[%c48] : memref<98xf32, #tpu.memory_space<smem>>
    %c97 = arith.constant 97 : index
    %549 = memref.load %arg1[%c97] : memref<98xf32, #tpu.memory_space<smem>>
    %550 = vector.broadcast %548 : f32 to vector<1x256xf32>
    %551 = arith.mulf %550, %94 : vector<1x256xf32>
    %552 = arith.addf %547, %551 : vector<1x256xf32>
    %553 = vector.broadcast %549 : f32 to vector<1x256xf32>
    %554 = arith.mulf %553, %99 : vector<1x256xf32>
    %555 = arith.addf %552, %554 : vector<1x256xf32>
    %c-3_i32_44 = arith.constant -3 : i32
    %556 = vector.broadcast %c-3_i32_44 : i32 to vector<1x256xi32>
    %557 = arith.cmpi sge, %8, %556 : vector<1x256xi32>
    %c13_i32_45 = arith.constant 13 : i32
    %558 = vector.broadcast %c13_i32_45 : i32 to vector<1x256xi32>
    %559 = arith.cmpi slt, %8, %558 : vector<1x256xi32>
    %560 = arith.andi %557, %559 : vector<1x256xi1>
    %561 = vector.extract_strided_slice %555 {offsets = [0, 48], sizes = [1, 208], strides = [1, 1]} : vector<1x256xf32> to vector<1x208xf32>
    %562 = vector.extract_strided_slice %555 {offsets = [0, 0], sizes = [1, 48], strides = [1, 1]} : vector<1x256xf32> to vector<1x48xf32>
    %563 = tpu.concatenate %561, %562 in 1 : vector<1x208xf32>, vector<1x48xf32> -> vector<1x256xf32>
    %cst_46 = arith.constant 0.000000e+00 : f32
    %564 = vector.broadcast %cst_46 : f32 to vector<1x256xf32>
    %565 = arith.select %560, %563, %564 : vector<1x256xi1>, vector<1x256xf32>
    %566 = arith.addf %498, %565 : vector<1x256xf32>
    %567 = arith.negf %566 : vector<1x256xf32>
    %568 = math.exp %567 : vector<1x256xf32>
    %cst_47 = arith.constant 1.000000e+00 : f32
    %569 = vector.broadcast %cst_47 : f32 to vector<1x256xf32>
    %570 = arith.addf %569, %568 : vector<1x256xf32>
    %571 = arith.divf %569, %570 : vector<1x256xf32>
    %572 = vector.broadcast %571 : vector<1x256xf32> to vector<4x256xf32>
    %573 = arith.mulf %1, %572 : vector<4x256xf32>
    %c0_48 = arith.constant 0 : index
    %c0_49 = arith.constant 0 : index
    %c0_50 = arith.constant 0 : index
    %574 = vector.load %arg4[%c0_48, %c0_49, %c0_50] : memref<1x4x256xf32, #tpu.memory_space<vmem>>, vector<1x4x256xf32>
    %575 = vector.shape_cast %574 : vector<1x4x256xf32> to vector<4x256xf32>
    %576 = vector.shape_cast %573 : vector<4x256xf32> to vector<1x4x256xf32>
    tpu.vector_store %arg4[%c0_48, %c0_49, %c0_50], %576 {strides = array<i32>} : memref<1x4x256xf32, #tpu.memory_space<vmem>>, vector<1x4x256xf32>,
    return
  }
  func.func @transform_0(%arg0: i32) -> i32 {
    %c0_i32 = arith.constant 0 : i32
    %c0_i32_0 = arith.constant 0 : i32
    return %c0_i32 : i32
  }
  func.func @transform_1(%arg0: i32) -> (i32, i32) {
    %c0_i32 = arith.constant 0 : i32
    %c0_i32_0 = arith.constant 0 : i32
    %c0_i32_1 = arith.constant 0 : i32
    return %c0_i32, %c0_i32_0 : i32, i32
  }
  func.func @transform_2(%arg0: i32) -> (i32, i32, i32) {
    %c0_i32 = arith.constant 0 : i32
    %c0_i32_0 = arith.constant 0 : i32
    %c0_i32_1 = arith.constant 0 : i32
    return %arg0, %c0_i32, %c0_i32_0 : i32, i32, i32
  }
  func.func @transform_3(%arg0: i32) -> (i32, i32, i32) {
    %c0_i32 = arith.constant 0 : i32
    %c0_i32_0 = arith.constant 0 : i32
    %c0_i32_1 = arith.constant 0 : i32
    return %arg0, %c0_i32, %c0_i32_0 : i32, i32, i32
  }
}

</mosaic_0001>

<llo_original>
// kernel: tpu_custom_call.1
$region0: #{tpu_custom_call.1}
  #allocation0 [shape = 'u32[]', space=smem, size = 0x4, offset = 0x4, fixed_abs, tag = 'smem constant byte address 0x4 - core index']
  #allocation1 [shape = 'u32[72,128]{1,0:T(1,128)}', space=vmem, size = 0x9000, scoped, tag = 'internal scratch']
  %s0 = inlined_call_operand.hbm [shape: f32[98], index: 0, kind: input, shape index: {}]
  %s1 = inlined_call_operand.hbm [shape: s32[2,256], index: 1, kind: input, shape index: {}]
  %s2 = inlined_call_operand.hbm [shape: f32[2,4,256], index: 2, kind: input, shape index: {}]
  %s3 = inlined_call_operand.hbm [shape: f32[2,4,256], index: 3, kind: output, shape index: {}]
  %s4 = sld [smem:[#allocation0]]
  $region57: #{tpu_custom_call.1} parent=0
    _
  %s6 = ssub.s32 1, %s4
  %s7 = scalar_select 0, %s6, %s4
  $region1: #{tpu_custom_call.1} parent=0
    #allocation2 [shape = 'u8[512]{0}', space=smem, size = 0x200, scoped, tag = 'input window, operand 0, single buffered']
    #allocation3 [shape = 's32[2]{0}', space=sflag, size = 0x8, scoped, tag = 'scoped memory for tpu_custom_call.1']
    #allocation4 [shape = 's32[2]{0}', space=sflag, size = 0x8, scoped, tag = 'scoped memory for tpu_custom_call.1']
    #allocation5 [shape = 's32[2]{0}', space=sflag, size = 0x8, scoped, tag = 'scoped memory for tpu_custom_call.1']
    #allocation6 [shape = 'u8[2048]{0}', space=vmem, size = 0x800, scoped, tag = 'input window, operand 1, single buffered']
    #allocation7 [shape = 'u8[8192]{0}', space=vmem, size = 0x2000, scoped, tag = 'input window, operand 2']
    #allocation8 [shape = 's32[2]{0}', space=sflag, size = 0x8, scoped, tag = 'scoped memory for tpu_custom_call.1']
    #allocation9 [shape = 'u8[8192]{0}', space=vmem, size = 0x2000, scoped, tag = 'output window, operand 0']
    %8 = vsyncpa [#allocation5], 0
    %9 = vsyncpa [#allocation3], 0
    %10 = vsyncpa [#allocation8], 0
    %s11 = scalar_lea.sflag [#allocation8], 1
    %12 = vsyncpa %s11, 0
    %13 = vsyncpa [#allocation4], 0
    %s14 = scalar_lea.sflag [#allocation4], 1
    %15 = vsyncpa %s14, 0
    loop: start=0, step=1, limit=4
    $region2: #{tpu_custom_call.1} parent=1 // loop_pre_header
      _
    $region3: #{tpu_custom_call.1} parent=1 // loop_header
      %s17 = sphi 0, %s21
      %p18 = scmp.ge.s32.totalorder %s17, 4
      %s25 = sphi 0, %s25
      %s27 = sphi 0, %s25
      %s28 = sphi 0, %s27
      %s42 = sphi 0, %s28
      %s46 = sphi 0, %s46
      %s48 = sphi 0, %s46
      %s49 = sphi 0, %s48
      %s63 = sphi 0, %s49
      %s69 = sphi 0, %s71
      %s72 = sphi 0, %s69
      %s73 = sphi 0, %s72
      %s89 = sphi 0, %s73
      %s95 = sphi 0, %s97
      %s98 = sphi 0, %s95
      %s99 = sphi 0, %s98
      %s115 = sphi 0, %s99
    $region4: #{tpu_custom_call.1} parent=1 // loop_header_branch
      %20 = sbr.rel (%p18) target = $region8
    $region5: #{tpu_custom_call.1} parent=1 // loop_body
      %s22 = ssub.s32 %s17, 1
      %s23 = ssub.s32 %s17, 2
      %s24 = sadd.s32 %s17, 1
      %s26 = sadd.s32 %s25, 1
      %p29 = scmp.eq.s32.totalorder %s17, 1
      %p30 = scmp.ne.s32.totalorder %s25, %s27
      %p31 = scmp.eq.s32.totalorder %s17, 0
      %p32 = por %p30, %p31
      %p33 = scmp.ne.s32.totalorder %s25, %s27
      %p34 = scmp.eq.s32.totalorder %s22, 1
      %p35 = por %p33, %p34
      %p36 = scmp.ne.s32.totalorder %s27, %s28
      %p37 = scmp.eq.s32.totalorder %s22, 0
      %p38 = por %p36, %p37
      %p39 = scmp.ne.s32.totalorder %s27, %s28
      %p40 = scmp.eq.s32.totalorder %s23, 1
      %p41 = por %p39, %p40
      %p43 = scmp.ne.s32.totalorder %s28, %s42
      %p44 = scmp.eq.s32.totalorder %s23, 0
      %p45 = por %p43, %p44
      %s47 = sadd.s32 %s46, 1
      %p50 = scmp.eq.s32.totalorder %s17, 1
      %p51 = scmp.ne.s32.totalorder %s46, %s48
      %p52 = scmp.eq.s32.totalorder %s17, 0
      %p53 = por %p51, %p52
      %p54 = scmp.ne.s32.totalorder %s46, %s48
      %p55 = scmp.eq.s32.totalorder %s22, 1
      %p56 = por %p54, %p55
      %p57 = scmp.ne.s32.totalorder %s48, %s49
      %p58 = scmp.eq.s32.totalorder %s22, 0
      %p59 = por %p57, %p58
      %p60 = scmp.ne.s32.totalorder %s48, %s49
      %p61 = scmp.eq.s32.totalorder %s23, 1
      %p62 = por %p60, %p61
      %p64 = scmp.ne.s32.totalorder %s49, %s63
      %p65 = scmp.eq.s32.totalorder %s23, 0
      %p66 = por %p64, %p65
      %s67 = ssub.s32 %s17, %s24
      %p68 = scmp.eq.s32.totalorder %s67, 0
      %s70 = sadd.s32 %s69, 1
      %s71 = scalar_select %p68, %s69, %s70
      %p74 = pneg %p68
      %p75 = scmp.eq.s32.totalorder %s17, 1
      %p76 = por %p74, %p75
      %p77 = scmp.ne.s32.totalorder %s69, %s72
      %p78 = scmp.eq.s32.totalorder %s17, 0
      %p79 = por %p77, %p78
      %p80 = scmp.ne.s32.totalorder %s69, %s72
      %p81 = scmp.eq.s32.totalorder %s22, 1
      %p82 = por %p80, %p81
      %p83 = scmp.ne.s32.totalorder %s72, %s73
      %p84 = scmp.eq.s32.totalorder %s22, 0
      %p85 = por %p83, %p84
      %p86 = scmp.ne.s32.totalorder %s72, %s73
      %p87 = scmp.eq.s32.totalorder %s23, 1
      %p88 = por %p86, %p87
      %p90 = scmp.ne.s32.totalorder %s73, %s89
      %p91 = scmp.eq.s32.totalorder %s23, 0
      %p92 = por %p90, %p91
      %s93 = ssub.s32 %s17, %s24
      %p94 = scmp.eq.s32.totalorder %s93, 0
      %s96 = sadd.s32 %s95, 1
      %s97 = scalar_select %p94, %s95, %s96
      %p100 = pneg %p94
      %p101 = scmp.eq.s32.totalorder %s17, 1
      %p102 = por %p100, %p101
      %p103 = scmp.ne.s32.totalorder %s95, %s98
      %p104 = scmp.eq.s32.totalorder %s17, 0
      %p105 = por %p103, %p104
      %p106 = scmp.ne.s32.totalorder %s95, %s98
      %p107 = scmp.eq.s32.totalorder %s22, 1
      %p108 = por %p106, %p107
      %p109 = scmp.ne.s32.totalorder %s98, %s99
      %p110 = scmp.eq.s32.totalorder %s22, 0
      %p111 = por %p109, %p110
      %p112 = scmp.ne.s32.totalorder %s98, %s99
      %p113 = scmp.eq.s32.totalorder %s23, 1
      %p114 = por %p112, %p113
      %p116 = scmp.ne.s32.totalorder %s99, %s115
      %p117 = scmp.eq.s32.totalorder %s23, 0
      %p118 = por %p116, %p117
      %p119 = scmp.le.s32.totalorder 1, %s17
      %p120 = scmp.lt.s32.totalorder %s17, 3
      %p121 = pnand %p119, %p120
      %p122 = pneg %p121
      // Predicated region
      $region9: #{tpu_custom_call.1} parent=5 // pred_check
        _
      $region10: #{tpu_custom_call.1} parent=5 // pred_check_branch
        %124 = sbr.rel (%p121) target = $region12
      $region11: #{tpu_custom_call.1} parent=5 // pred_region
        %s125 = ssub.s32 %s17, 1
        // Predicated region
        $region13: #{tpu_custom_call.1} parent=11 // pred_check
          %p126 = pneg %p38
        $region14: #{tpu_custom_call.1} parent=11 // pred_check_branch
          %128 = sbr.rel (%p126) target = $region16
        $region15: #{tpu_custom_call.1} parent=11 // pred_region
          %130 = vsyncadd [#allocation5], 0
          %s132 = sshll.u32 %s0, 4
          %s133 = int_to_ptr.hbm [resolvable:$true] %s132
          %135 = dma.hbm_to_smem %s133, 16, [#allocation2], [#allocation5]
        $region16: #{tpu_custom_call.1} parent=11 // pred_fallthru
          _
        // Predicated region
        $region17: #{tpu_custom_call.1} parent=11 // pred_check
          %p136 = pneg %p59
        $region18: #{tpu_custom_call.1} parent=11 // pred_check_branch
          %138 = sbr.rel (%p136) target = $region20
        $region19: #{tpu_custom_call.1} parent=11 // pred_region
          %140 = vsyncadd [#allocation3], 0
          %s142 = sshll.u32 %s1, 4
          %s143 = int_to_ptr.hbm [resolvable:$true] %s142
          %s144 = sshll.u32 [#allocation6], 4
          %s145 = int_to_ptr.vmem [resolvable:$true] %s144
          %147 = dma.hbm_to_vmem [thread:$0]  %s143, 64, %s145, [#allocation3]
        $region20: #{tpu_custom_call.1} parent=11 // pred_fallthru
          _
      $region12: #{tpu_custom_call.1} parent=5 // pred_fallthru
        _
      %p148 = scmp.lt.s32.totalorder %s17, 2
      // Predicated region
      $region21: #{tpu_custom_call.1} parent=5 // pred_check
        %p149 = pneg %p148
      $region22: #{tpu_custom_call.1} parent=5 // pred_check_branch
        %151 = sbr.rel (%p149) target = $region24
      $region23: #{tpu_custom_call.1} parent=5 // pred_region
        // Predicated region
        $region25: #{tpu_custom_call.1} parent=23 // pred_check
          %p152 = pneg %p79
        $region26: #{tpu_custom_call.1} parent=23 // pred_check_branch
          %154 = sbr.rel (%p152) target = $region28
        $region27: #{tpu_custom_call.1} parent=23 // pred_region
          %s155 = sand.u32 %s69, 1
          %s156 = scalar_lea.sflag [#allocation8], %s155
          %s157 = sand.u32 %s69, 1
          %s158 = smul.addr %s157, 8
          %s159 = scalar_lea.vmem [#allocation7], %s158
          %161 = vsyncadd %s156, 0
          %s162 = smul.addr %s17, 2
          %s163 = smul.addr %s162, 4
          %s164 = scalar_lea.hbm %s2, %s163
          %s166 = sshll.u32 %s164, 4
          %s167 = int_to_ptr.hbm [resolvable:$true] %s166
          %s168 = sshll.u32 %s159, 4
          %s169 = int_to_ptr.vmem [resolvable:$true] %s168
          %171 = dma.hbm_to_vmem [thread:$0]  %s167, 128, %s169, %s156
        $region28: #{tpu_custom_call.1} parent=23 // pred_fallthru
          _
      $region24: #{tpu_custom_call.1} parent=5 // pred_fallthru
        _
      %p172 = scmp.le.s32.totalorder 1, %s17
      %p173 = scmp.lt.s32.totalorder %s17, 3
      %p174 = pnand %p172, %p173
      %p175 = pneg %p174
      // Predicated region
      $region29: #{tpu_custom_call.1} parent=5 // pred_check
        _
      $region30: #{tpu_custom_call.1} parent=5 // pred_check_branch
        %177 = sbr.rel (%p174) target = $region32
      $region31: #{tpu_custom_call.1} parent=5 // pred_region
        %s178 = ssub.s32 %s17, 1
        // Predicated region
        $region33: #{tpu_custom_call.1} parent=31 // pred_check
          %p179 = pneg %p38
        $region34: #{tpu_custom_call.1} parent=31 // pred_check_branch
          %181 = sbr.rel (%p179) target = $region36
        $region35: #{tpu_custom_call.1} parent=31 // pred_region
          %183 = dma.done [#allocation5], 16
        $region36: #{tpu_custom_call.1} parent=31 // pred_fallthru
          _
        // Predicated region
        $region37: #{tpu_custom_call.1} parent=31 // pred_check
          %p184 = pneg %p59
        $region38: #{tpu_custom_call.1} parent=31 // pred_check_branch
          %186 = sbr.rel (%p184) target = $region40
        $region39: #{tpu_custom_call.1} parent=31 // pred_region
          %188 = dma.done [#allocation3], 64
        $region40: #{tpu_custom_call.1} parent=31 // pred_fallthru
          _
        %s189 = sand.u32 %s72, 1
        %s190 = scalar_lea.sflag [#allocation8], %s189
        %s191 = sand.u32 %s72, 1
        %s192 = smul.addr %s191, 8
        %s193 = scalar_lea.vmem [#allocation7], %s192
        // Predicated region
        $region41: #{tpu_custom_call.1} parent=31 // pred_check
          %p194 = pneg %p85
        $region42: #{tpu_custom_call.1} parent=31 // pred_check_branch
          %196 = sbr.rel (%p194) target = $region44
        $region43: #{tpu_custom_call.1} parent=31 // pred_region
          %198 = dma.done %s190, 128
        $region44: #{tpu_custom_call.1} parent=31 // pred_fallthru
          _
        %199 = sfence
        %p200 = pneg %p38
        %p201 = pneg %p35
        %p202 = pneg %p59
        %p203 = pneg %p56
        %s204 = sand.u32 %s72, 1
        %s205 = scalar_lea.sflag [#allocation8], %s204
        %s206 = sand.u32 %s72, 1
        %s207 = smul.addr %s206, 8
        %s208 = scalar_lea.vmem [#allocation7], %s207
        %p209 = pneg %p85
        %p210 = pneg %p82
        %p211 = pneg %p111
        %p212 = pneg %p108
        %s213 = sand.u32 %s98, 1
        %s214 = scalar_lea.sflag [#allocation4], %s213
        %s215 = sand.u32 %s98, 1
        %s216 = smul.addr %s215, 8
        %s217 = scalar_lea.vmem [#allocation9], %s216
        %v218 = vld [vmem:[%s193] sm:$0xff]
        %220 = vst [vmem:[#allocation1] ss:$2 sm:$0xff] %v218
        %v221 = vld.sshfl [vmem:[#allocation1] sm:$0xff pattern:$0x75316420]
        %v222 = vld.sshfl [vmem:[#allocation1 + $0x8] sm:$0xff pattern:$0x75316420]
        %vm225 = vcmask 1043456
        %v226 = vsel %vm225, %v221, -inf
        %v227 = vrot.slane %v226, 4
        %v228 = vmax.f32 %v226, %v227
        %v229 = vrot.slane %v228, 2
        %v230 = vmax.f32 %v228, %v229
        %v231 = vrot.slane %v230, 1
        %v232 = vmax.f32 %v230, %v231
        %v233 = vsel %vm225, %v222, -inf
        %v234 = vrot.slane %v233, 4
        %v235 = vmax.f32 %v233, %v234
        %v236 = vrot.slane %v235, 2
        %v237 = vmax.f32 %v235, %v236
        %v238 = vrot.slane %v237, 1
        %v239 = vmax.f32 %v237, %v238
        %240 = vst [vmem:[#allocation1] ss:$2 sm:$0xff] %v218
        %v241 = vld.sshfl [vmem:[#allocation1] sm:$0xff pattern:$0x75316420]
        %v242 = vld.sshfl [vmem:[#allocation1 + $0x8] sm:$0xff pattern:$0x75316420]
        %v245 = vsel %vm225, %v241, 0.0
        %v246 = vrot.slane %v245, 4
        %v247 = vadd.f32 %v245, %v246
        %v248 = vrot.slane %v247, 2
        %v249 = vadd.f32 %v247, %v248
        %v250 = vrot.slane %v249, 1
        %v251 = vadd.f32 %v249, %v250
        %v252 = vsel %vm225, %v242, 0.0
        %v253 = vrot.slane %v252, 4
        %v254 = vadd.f32 %v252, %v253
        %v255 = vrot.slane %v254, 2
        %v256 = vadd.f32 %v254, %v255
        %v257 = vrot.slane %v256, 1
        %v258 = vadd.f32 %v256, %v257
        %v259 = vmul.f32 %v251, 0.25
        %v260 = vmul.f32 %v258, 0.25
        %v261 = vld [vmem:[#allocation6] ss:$2 sm:$0x3]
        %s262 = scalar_lea.vmem [#allocation6], 1
        %v263 = vld [vmem:[%s262] ss:$2 sm:$0x3]
        %vm264 = vcmp.ge.s32.totalorder %v263, 3
        %vm265 = vcmp.lt.s32.totalorder %v263, 19
        %vm266 = vmand %vm264, %vm265
        %268 = vrot.lane.b32.xlu0 %v239, 3
        %v269 = vpop.permute.xlu0 %268
        %272 = vrot.lane.b32.xlu0 %v232, 3
        %v273 = vpop.permute.xlu0 %272
        %vm274 = vcmask 23552
        %v275 = vsel %vm274, %v273, %v269
        %v277 = vsel %vm274, %v269, %v273
        %v279 = vrot.slane %v275, 7
        %vm280 = vcmask 1040384
        %v281 = vsel %vm280, %v277, %v279
        %v283 = vsel %vm266, %v281, 0.0
        %285 = vrot.lane.b32.xlu0 %v260, 3
        %v286 = vpop.permute.xlu0 %285
        %289 = vrot.lane.b32.xlu0 %v259, 3
        %v290 = vpop.permute.xlu0 %289
        %v291 = vsel %vm274, %v290, %v286
        %v293 = vsel %vm274, %v286, %v290
        %v295 = vrot.slane %v291, 7
        %v296 = vsel %vm280, %v293, %v295
        %v298 = vsel %vm266, %v296, 0.0
        %vm299 = vcmp.ge.s32.totalorder %v263, 2
        %vm300 = vcmp.lt.s32.totalorder %v263, 18
        %vm301 = vmand %vm299, %vm300
        %302 = vrot.lane.b32.xlu0 %v239, 2
        %v303 = vpop.permute.xlu0 %302
        %305 = vrot.lane.b32.xlu0 %v232, 2
        %v306 = vpop.permute.xlu0 %305
        %vm307 = vcmask 15360
        %v308 = vsel %vm307, %v306, %v303
        %v310 = vsel %vm307, %v303, %v306
        %v312 = vrot.slane %v308, 7
        %v313 = vsel %vm280, %v310, %v312
        %v315 = vsel %vm301, %v313, 0.0
        %316 = vrot.lane.b32.xlu0 %v260, 2
        %v317 = vpop.permute.xlu0 %316
        %319 = vrot.lane.b32.xlu0 %v259, 2
        %v320 = vpop.permute.xlu0 %319
        %v321 = vsel %vm307, %v320, %v317
        %v323 = vsel %vm307, %v317, %v320
        %v325 = vrot.slane %v321, 7
        %v326 = vsel %vm280, %v323, %v325
        %v328 = vsel %vm301, %v326, 0.0
        %vm329 = vcmp.ge.s32.totalorder %v263, 1
        %vm330 = vcmp.lt.s32.totalorder %v263, 17
        %vm331 = vmand %vm329, %vm330
        %332 = vrot.lane.b32.xlu0 %v239, 1
        %v333 = vpop.permute.xlu0 %332
        %335 = vrot.lane.b32.xlu0 %v232, 1
        %v336 = vpop.permute.xlu0 %335
        %vm337 = vcmask 7168
        %v338 = vsel %vm337, %v336, %v333
        %v340 = vsel %vm337, %v333, %v336
        %v342 = vrot.slane %v338, 7
        %v343 = vsel %vm280, %v340, %v342
        %v345 = vsel %vm331, %v343, 0.0
        %346 = vrot.lane.b32.xlu0 %v260, 1
        %v347 = vpop.permute.xlu0 %346
        %349 = vrot.lane.b32.xlu0 %v259, 1
        %v350 = vpop.permute.xlu0 %349
        %v351 = vsel %vm337, %v350, %v347
        %v353 = vsel %vm337, %v347, %v350
        %v355 = vrot.slane %v351, 7
        %v356 = vsel %vm280, %v353, %v355
        %v358 = vsel %vm331, %v356, 0.0
        %vm359 = vcmp.ge.s32.totalorder %v263, 4294967295
        %vm360 = vcmp.lt.s32.totalorder %v263, 15
        %vm361 = vmand %vm359, %vm360
        %362 = vrot.lane.b32.xlu0 %v232, 127
        %v363 = vpop.permute.xlu0 %362
        %364 = vrot.lane.b32.xlu0 %v239, 127
        %v365 = vpop.permute.xlu0 %364
        %vm366 = vcmask 1039360
        %v367 = vsel %vm366, %v363, %v365
        %v370 = vsel %vm366, %v365, %v363
        %v372 = vrot.slane %v370, 7
        %v373 = vsel %vm280, %v367, %v372
        %v375 = vsel %vm361, %v373, 0.0
        %376 = vrot.lane.b32.xlu0 %v259, 127
        %v377 = vpop.permute.xlu0 %376
        %378 = vrot.lane.b32.xlu0 %v260, 127
        %v379 = vpop.permute.xlu0 %378
        %v380 = vsel %vm366, %v377, %v379
        %v383 = vsel %vm366, %v379, %v377
        %v385 = vrot.slane %v383, 7
        %v386 = vsel %vm280, %v380, %v385
        %v388 = vsel %vm361, %v386, 0.0
        %vm389 = vcmp.ge.s32.totalorder %v263, 4294967294
        %vm390 = vcmp.lt.s32.totalorder %v263, 14
        %vm391 = vmand %vm389, %vm390
        %392 = vrot.lane.b32.xlu0 %v232, 126
        %v393 = vpop.permute.xlu0 %392
        %394 = vrot.lane.b32.xlu0 %v239, 126
        %v395 = vpop.permute.xlu0 %394
        %vm396 = vcmask 1031168
        %v397 = vsel %vm396, %v393, %v395
        %v400 = vsel %vm396, %v395, %v393
        %v402 = vrot.slane %v400, 7
        %v403 = vsel %vm280, %v397, %v402
        %v405 = vsel %vm391, %v403, 0.0
        %406 = vrot.lane.b32.xlu0 %v259, 126
        %v407 = vpop.permute.xlu0 %406
        %408 = vrot.lane.b32.xlu0 %v260, 126
        %v409 = vpop.permute.xlu0 %408
        %v410 = vsel %vm396, %v407, %v409
        %v413 = vsel %vm396, %v409, %v407
        %v415 = vrot.slane %v413, 7
        %v416 = vsel %vm280, %v410, %v415
        %v418 = vsel %vm391, %v416, 0.0
        %vm419 = vcmp.ge.s32.totalorder %v263, 4294967293
        %vm420 = vcmp.lt.s32.totalorder %v263, 13
        %vm421 = vmand %vm419, %vm420
        %422 = vrot.lane.b32.xlu0 %v232, 125
        %v423 = vpop.permute.xlu0 %422
        %424 = vrot.lane.b32.xlu0 %v239, 125
        %v425 = vpop.permute.xlu0 %424
        %vm426 = vcmask 1022976
        %v427 = vsel %vm426, %v423, %v425
        %v430 = vsel %vm426, %v425, %v423
        %v432 = vrot.slane %v430, 7
        %v433 = vsel %vm280, %v427, %v432
        %v435 = vsel %vm421, %v433, 0.0
        %436 = vrot.lane.b32.xlu0 %v259, 125
        %v437 = vpop.permute.xlu0 %436
        %438 = vrot.lane.b32.xlu0 %v260, 125
        %v439 = vpop.permute.xlu0 %438
        %v440 = vsel %vm426, %v437, %v439
        %v443 = vsel %vm426, %v439, %v437
        %v445 = vrot.slane %v443, 7
        %v446 = vsel %vm280, %v440, %v445
        %v448 = vsel %vm421, %v446, 0.0
        %s449 = sld [smem:[#allocation2]]
        %s450 = sld [smem:[#allocation2 + $0x31]]
        %v451 = vstv %s449
        %v452 = vmul.f32 %v451, %v283
        %v453 = vadd.f32 %v452, 0.0
        %v454 = vstv %s450
        %v455 = vmul.f32 %v454, %v298
        %v456 = vadd.f32 %v453, %v455
        %s457 = sld [smem:[#allocation2 + $0x1]]
        %s458 = sld [smem:[#allocation2 + $0x32]]
        %v459 = vstv %s457
        %v460 = vmul.f32 %v459, %v315
        %v461 = vadd.f32 %v456, %v460
        %v462 = vstv %s458
        %v463 = vmul.f32 %v462, %v328
        %v464 = vadd.f32 %v461, %v463
        %s465 = sld [smem:[#allocation2 + $0x2]]
        %s466 = sld [smem:[#allocation2 + $0x33]]
        %v467 = vstv %s465
        %v468 = vmul.f32 %v467, %v345
        %v469 = vadd.f32 %v464, %v468
        %v470 = vstv %s466
        %v471 = vmul.f32 %v470, %v358
        %v472 = vadd.f32 %v469, %v471
        %s473 = sld [smem:[#allocation2 + $0x3]]
        %s474 = sld [smem:[#allocation2 + $0x34]]
        %v475 = vstv %s473
        %v476 = vmul.f32 %v475, %v232
        %v477 = vmul.f32 %v475, %v239
        %v480 = vrot.slane %v477, 7
        %v481 = vsel %vm280, %v476, %v480
        %v483 = vadd.f32 %v472, %v481
        %v484 = vstv %s474
        %v485 = vmul.f32 %v484, %v259
        %v486 = vmul.f32 %v484, %v260
        %v489 = vrot.slane %v486, 7
        %v490 = vsel %vm280, %v485, %v489
        %v492 = vadd.f32 %v483, %v490
        %s493 = sld [smem:[#allocation2 + $0x4]]
        %s494 = sld [smem:[#allocation2 + $0x35]]
        %v495 = vstv %s493
        %v496 = vmul.f32 %v495, %v375
        %v497 = vadd.f32 %v492, %v496
        %v498 = vstv %s494
        %v499 = vmul.f32 %v498, %v388
        %v500 = vadd.f32 %v497, %v499
        %s501 = sld [smem:[#allocation2 + $0x5]]
        %s502 = sld [smem:[#allocation2 + $0x36]]
        %v503 = vstv %s501
        %v504 = vmul.f32 %v503, %v405
        %v505 = vadd.f32 %v500, %v504
        %v506 = vstv %s502
        %v507 = vmul.f32 %v506, %v418
        %v508 = vadd.f32 %v505, %v507
        %s509 = sld [smem:[#allocation2 + $0x6]]
        %s510 = sld [smem:[#allocation2 + $0x37]]
        %v511 = vstv %s509
        %v512 = vmul.f32 %v511, %v435
        %v513 = vadd.f32 %v508, %v512
        %v514 = vstv %s510
        %v515 = vmul.f32 %v514, %v448
        %v516 = vadd.f32 %v513, %v515
        %vm517 = vcmp.ge.s32.totalorder %v261, 3
        %vm518 = vcmp.lt.s32.totalorder %v261, 19
        %vm519 = vmand %vm517, %vm518
        %v521 = vperm.slane %v516, 1
        %522 = vrot.lane.b32.xlu0 %v521, 48
        %v523 = vpop.permute.xlu0 %522
        %v525 = vperm.slane %v516, 0
        %526 = vrot.lane.b32.xlu0 %v525, 48
        %v527 = vpop.permute.xlu0 %526
        %vm528 = vcmask 392192
        %v529 = vsel %vm528, %v527, %v523
        %v531 = vsel %vm528, %v523, %v527
        %v533 = vrot.slane %v529, 7
        %v534 = vsel %vm280, %v531, %v533
        %v536 = vsel %vm519, %v534, 0.0
        %v537 = vadd.f32 %v536, 0.0
        %s538 = sld [smem:[#allocation2 + $0x7]]
        %s539 = sld [smem:[#allocation2 + $0x38]]
        %v540 = vstv %s538
        %v541 = vmul.f32 %v540, %v283
        %v542 = vadd.f32 %v541, 0.0
        %v543 = vstv %s539
        %v544 = vmul.f32 %v543, %v298
        %v545 = vadd.f32 %v542, %v544
        %s546 = sld [smem:[#allocation2 + $0x8]]
        %s547 = sld [smem:[#allocation2 + $0x39]]
        %v548 = vstv %s546
        %v549 = vmul.f32 %v548, %v315
        %v550 = vadd.f32 %v545, %v549
        %v551 = vstv %s547
        %v552 = vmul.f32 %v551, %v328
        %v553 = vadd.f32 %v550, %v552
        %s554 = sld [smem:[#allocation2 + $0x9]]
        %s555 = sld [smem:[#allocation2 + $0x3a]]
        %v556 = vstv %s554
        %v557 = vmul.f32 %v556, %v345
        %v558 = vadd.f32 %v553, %v557
        %v559 = vstv %s555
        %v560 = vmul.f32 %v559, %v358
        %v561 = vadd.f32 %v558, %v560
        %s562 = sld [smem:[#allocation2 + $0xa]]
        %s563 = sld [smem:[#allocation2 + $0x3b]]
        %v564 = vstv %s562
        %v565 = vmul.f32 %v564, %v232
        %v566 = vmul.f32 %v564, %v239
        %v569 = vrot.slane %v566, 7
        %v570 = vsel %vm280, %v565, %v569
        %v572 = vadd.f32 %v561, %v570
        %v573 = vstv %s563
        %v574 = vmul.f32 %v573, %v259
        %v575 = vmul.f32 %v573, %v260
        %v578 = vrot.slane %v575, 7
        %v579 = vsel %vm280, %v574, %v578
        %v581 = vadd.f32 %v572, %v579
        %s582 = sld [smem:[#allocation2 + $0xb]]
        %s583 = sld [smem:[#allocation2 + $0x3c]]
        %v584 = vstv %s582
        %v585 = vmul.f32 %v584, %v375
        %v586 = vadd.f32 %v581, %v585
        %v587 = vstv %s583
        %v588 = vmul.f32 %v587, %v388
        %v589 = vadd.f32 %v586, %v588
        %s590 = sld [smem:[#allocation2 + $0xc]]
        %s591 = sld [smem:[#allocation2 + $0x3d]]
        %v592 = vstv %s590
        %v593 = vmul.f32 %v592, %v405
        %v594 = vadd.f32 %v589, %v593
        %v595 = vstv %s591
        %v596 = vmul.f32 %v595, %v418
        %v597 = vadd.f32 %v594, %v596
        %s598 = sld [smem:[#allocation2 + $0xd]]
        %s599 = sld [smem:[#allocation2 + $0x3e]]
        %v600 = vstv %s598
        %v601 = vmul.f32 %v600, %v435
        %v602 = vadd.f32 %v597, %v601
        %v603 = vstv %s599
        %v604 = vmul.f32 %v603, %v448
        %v605 = vadd.f32 %v602, %v604
        %vm606 = vcmp.ge.s32.totalorder %v261, 2
        %vm607 = vcmp.lt.s32.totalorder %v261, 18
        %vm608 = vmand %vm606, %vm607
        %v610 = vperm.slane %v605, 1
        %611 = vrot.lane.b32.xlu0 %v610, 32
        %v612 = vpop.permute.xlu0 %611
        %v614 = vperm.slane %v605, 0
        %615 = vrot.lane.b32.xlu0 %v614, 32
        %v616 = vpop.permute.xlu0 %615
        %vm617 = vcmask 261120
        %v618 = vsel %vm617, %v616, %v612
        %v620 = vsel %vm617, %v612, %v616
        %v622 = vrot.slane %v618, 7
        %v623 = vsel %vm280, %v620, %v622
        %v625 = vsel %vm608, %v623, 0.0
        %v626 = vadd.f32 %v537, %v625
        %s627 = sld [smem:[#allocation2 + $0xe]]
        %s628 = sld [smem:[#allocation2 + $0x3f]]
        %v629 = vstv %s627
        %v630 = vmul.f32 %v629, %v283
        %v631 = vadd.f32 %v630, 0.0
        %v632 = vstv %s628
        %v633 = vmul.f32 %v632, %v298
        %v634 = vadd.f32 %v631, %v633
        %s635 = sld [smem:[#allocation2 + $0xf]]
        %s636 = sld [smem:[#allocation2 + $0x40]]
        %v637 = vstv %s635
        %v638 = vmul.f32 %v637, %v315
        %v639 = vadd.f32 %v634, %v638
        %v640 = vstv %s636
        %v641 = vmul.f32 %v640, %v328
        %v642 = vadd.f32 %v639, %v641
        %s643 = sld [smem:[#allocation2 + $0x10]]
        %s644 = sld [smem:[#allocation2 + $0x41]]
        %v645 = vstv %s643
        %v646 = vmul.f32 %v645, %v345
        %v647 = vadd.f32 %v642, %v646
        %v648 = vstv %s644
        %v649 = vmul.f32 %v648, %v358
        %v650 = vadd.f32 %v647, %v649
        %s651 = sld [smem:[#allocation2 + $0x11]]
        %s652 = sld [smem:[#allocation2 + $0x42]]
        %v653 = vstv %s651
        %v654 = vmul.f32 %v653, %v232
        %v655 = vmul.f32 %v653, %v239
        %v658 = vrot.slane %v655, 7
        %v659 = vsel %vm280, %v654, %v658
        %v661 = vadd.f32 %v650, %v659
        %v662 = vstv %s652
        %v663 = vmul.f32 %v662, %v259
        %v664 = vmul.f32 %v662, %v260
        %v667 = vrot.slane %v664, 7
        %v668 = vsel %vm280, %v663, %v667
        %v670 = vadd.f32 %v661, %v668
        %s671 = sld [smem:[#allocation2 + $0x12]]
        %s672 = sld [smem:[#allocation2 + $0x43]]
        %v673 = vstv %s671
        %v674 = vmul.f32 %v673, %v375
        %v675 = vadd.f32 %v670, %v674
        %v676 = vstv %s672
        %v677 = vmul.f32 %v676, %v388
        %v678 = vadd.f32 %v675, %v677
        %s679 = sld [smem:[#allocation2 + $0x13]]
        %s680 = sld [smem:[#allocation2 + $0x44]]
        %v681 = vstv %s679
        %v682 = vmul.f32 %v681, %v405
        %v683 = vadd.f32 %v678, %v682
        %v684 = vstv %s680
        %v685 = vmul.f32 %v684, %v418
        %v686 = vadd.f32 %v683, %v685
        %s687 = sld [smem:[#allocation2 + $0x14]]
        %s688 = sld [smem:[#allocation2 + $0x45]]
        %v689 = vstv %s687
        %v690 = vmul.f32 %v689, %v435
        %v691 = vadd.f32 %v686, %v690
        %v692 = vstv %s688
        %v693 = vmul.f32 %v692, %v448
        %v694 = vadd.f32 %v691, %v693
        %vm695 = vcmp.ge.s32.totalorder %v261, 1
        %vm696 = vcmp.lt.s32.totalorder %v261, 17
        %vm697 = vmand %vm695, %vm696
        %v699 = vperm.slane %v694, 1
        %700 = vrot.lane.b32.xlu0 %v699, 16
        %v701 = vpop.permute.xlu0 %700
        %v703 = vperm.slane %v694, 0
        %704 = vrot.lane.b32.xlu0 %v703, 16
        %v705 = vpop.permute.xlu0 %704
        %vm706 = vcmask 130048
        %v707 = vsel %vm706, %v705, %v701
        %v709 = vsel %vm706, %v701, %v705
        %v711 = vrot.slane %v707, 7
        %v712 = vsel %vm280, %v709, %v711
        %v714 = vsel %vm697, %v712, 0.0
        %v715 = vadd.f32 %v626, %v714
        %s716 = sld [smem:[#allocation2 + $0x15]]
        %s717 = sld [smem:[#allocation2 + $0x46]]
        %v718 = vstv %s716
        %v719 = vmul.f32 %v718, %v283
        %v720 = vadd.f32 %v719, 0.0
        %v721 = vstv %s717
        %v722 = vmul.f32 %v721, %v298
        %v723 = vadd.f32 %v720, %v722
        %s724 = sld [smem:[#allocation2 + $0x16]]
        %s725 = sld [smem:[#allocation2 + $0x47]]
        %v726 = vstv %s724
        %v727 = vmul.f32 %v726, %v315
        %v728 = vadd.f32 %v723, %v727
        %v729 = vstv %s725
        %v730 = vmul.f32 %v729, %v328
        %v731 = vadd.f32 %v728, %v730
        %s732 = sld [smem:[#allocation2 + $0x17]]
        %s733 = sld [smem:[#allocation2 + $0x48]]
        %v734 = vstv %s732
        %v735 = vmul.f32 %v734, %v345
        %v736 = vadd.f32 %v731, %v735
        %v737 = vstv %s733
        %v738 = vmul.f32 %v737, %v358
        %v739 = vadd.f32 %v736, %v738
        %s740 = sld [smem:[#allocation2 + $0x18]]
        %s741 = sld [smem:[#allocation2 + $0x49]]
        %v742 = vstv %s740
        %v743 = vmul.f32 %v742, %v232
        %v744 = vmul.f32 %v742, %v239
        %v747 = vrot.slane %v744, 7
        %v748 = vsel %vm280, %v743, %v747
        %v750 = vadd.f32 %v739, %v748
        %v751 = vstv %s741
        %v752 = vmul.f32 %v751, %v259
        %v753 = vmul.f32 %v751, %v260
        %v756 = vrot.slane %v753, 7
        %v757 = vsel %vm280, %v752, %v756
        %v759 = vadd.f32 %v750, %v757
        %s760 = sld [smem:[#allocation2 + $0x19]]
        %s761 = sld [smem:[#allocation2 + $0x4a]]
        %v762 = vstv %s760
        %v763 = vmul.f32 %v762, %v375
        %v764 = vadd.f32 %v759, %v763
        %v765 = vstv %s761
        %v766 = vmul.f32 %v765, %v388
        %v767 = vadd.f32 %v764, %v766
        %s768 = sld [smem:[#allocation2 + $0x1a]]
        %s769 = sld [smem:[#allocation2 + $0x4b]]
        %v770 = vstv %s768
        %v771 = vmul.f32 %v770, %v405
        %v772 = vadd.f32 %v767, %v771
        %v773 = vstv %s769
        %v774 = vmul.f32 %v773, %v418
        %v775 = vadd.f32 %v772, %v774
        %s776 = sld [smem:[#allocation2 + $0x1b]]
        %s777 = sld [smem:[#allocation2 + $0x4c]]
        %v778 = vstv %s776
        %v779 = vmul.f32 %v778, %v435
        %v780 = vadd.f32 %v775, %v779
        %v781 = vstv %s777
        %v782 = vmul.f32 %v781, %v448
        %v783 = vadd.f32 %v780, %v782
        %v784 = vadd.f32 %v715, %v783
        %s785 = sld [smem:[#allocation2 + $0x1c]]
        %s786 = sld [smem:[#allocation2 + $0x4d]]
        %v787 = vstv %s785
        %v788 = vmul.f32 %v787, %v283
        %v789 = vadd.f32 %v788, 0.0
        %v790 = vstv %s786
        %v791 = vmul.f32 %v790, %v298
        %v792 = vadd.f32 %v789, %v791
        %s793 = sld [smem:[#allocation2 + $0x1d]]
        %s794 = sld [smem:[#allocation2 + $0x4e]]
        %v795 = vstv %s793
        %v796 = vmul.f32 %v795, %v315
        %v797 = vadd.f32 %v792, %v796
        %v798 = vstv %s794
        %v799 = vmul.f32 %v798, %v328
        %v800 = vadd.f32 %v797, %v799
        %s801 = sld [smem:[#allocation2 + $0x1e]]
        %s802 = sld [smem:[#allocation2 + $0x4f]]
        %v803 = vstv %s801
        %v804 = vmul.f32 %v803, %v345
        %v805 = vadd.f32 %v800, %v804
        %v806 = vstv %s802
        %v807 = vmul.f32 %v806, %v358
        %v808 = vadd.f32 %v805, %v807
        %s809 = sld [smem:[#allocation2 + $0x1f]]
        %s810 = sld [smem:[#allocation2 + $0x50]]
        %v811 = vstv %s809
        %v812 = vmul.f32 %v811, %v232
        %v813 = vmul.f32 %v811, %v239
        %v816 = vrot.slane %v813, 7
        %v817 = vsel %vm280, %v812, %v816
        %v819 = vadd.f32 %v808, %v817
        %v820 = vstv %s810
        %v821 = vmul.f32 %v820, %v259
        %v822 = vmul.f32 %v820, %v260
        %v825 = vrot.slane %v822, 7
        %v826 = vsel %vm280, %v821, %v825
        %v828 = vadd.f32 %v819, %v826
        %s829 = sld [smem:[#allocation2 + $0x20]]
        %s830 = sld [smem:[#allocation2 + $0x51]]
        %v831 = vstv %s829
        %v832 = vmul.f32 %v831, %v375
        %v833 = vadd.f32 %v828, %v832
        %v834 = vstv %s830
        %v835 = vmul.f32 %v834, %v388
        %v836 = vadd.f32 %v833, %v835
        %s837 = sld [smem:[#allocation2 + $0x21]]
        %s838 = sld [smem:[#allocation2 + $0x52]]
        %v839 = vstv %s837
        %v840 = vmul.f32 %v839, %v405
        %v841 = vadd.f32 %v836, %v840
        %v842 = vstv %s838
        %v843 = vmul.f32 %v842, %v418
        %v844 = vadd.f32 %v841, %v843
        %s845 = sld [smem:[#allocation2 + $0x22]]
        %s846 = sld [smem:[#allocation2 + $0x53]]
        %v847 = vstv %s845
        %v848 = vmul.f32 %v847, %v435
        %v849 = vadd.f32 %v844, %v848
        %v850 = vstv %s846
        %v851 = vmul.f32 %v850, %v448
        %v852 = vadd.f32 %v849, %v851
        %vm853 = vcmp.ge.s32.totalorder %v261, 4294967295
        %vm854 = vcmp.lt.s32.totalorder %v261, 15
        %vm855 = vmand %vm853, %vm854
        %v857 = vperm.slane %v852, 0
        %v858 = vperm.slane %v852, 1
        %859 = vrot.lane.b32.xlu0 %v857, 112
        %v860 = vpop.permute.xlu0 %859
        %861 = vrot.lane.b32.xlu0 %v858, 112
        %v862 = vpop.permute.xlu0 %861
        %vm863 = vcmask 916480
        %v864 = vsel %vm863, %v860, %v862
        %v867 = vsel %vm863, %v862, %v860
        %v869 = vrot.slane %v867, 7
        %v870 = vsel %vm280, %v864, %v869
        %v872 = vsel %vm855, %v870, 0.0
        %v873 = vadd.f32 %v784, %v872
        %s874 = sld [smem:[#allocation2 + $0x23]]
        %s875 = sld [smem:[#allocation2 + $0x54]]
        %v876 = vstv %s874
        %v877 = vmul.f32 %v876, %v283
        %v878 = vadd.f32 %v877, 0.0
        %v879 = vstv %s875
        %v880 = vmul.f32 %v879, %v298
        %v881 = vadd.f32 %v878, %v880
        %s882 = sld [smem:[#allocation2 + $0x24]]
        %s883 = sld [smem:[#allocation2 + $0x55]]
        %v884 = vstv %s882
        %v885 = vmul.f32 %v884, %v315
        %v886 = vadd.f32 %v881, %v885
        %v887 = vstv %s883
        %v888 = vmul.f32 %v887, %v328
        %v889 = vadd.f32 %v886, %v888
        %s890 = sld [smem:[#allocation2 + $0x25]]
        %s891 = sld [smem:[#allocation2 + $0x56]]
        %v892 = vstv %s890
        %v893 = vmul.f32 %v892, %v345
        %v894 = vadd.f32 %v889, %v893
        %v895 = vstv %s891
        %v896 = vmul.f32 %v895, %v358
        %v897 = vadd.f32 %v894, %v896
        %s898 = sld [smem:[#allocation2 + $0x26]]
        %s899 = sld [smem:[#allocation2 + $0x57]]
        %v900 = vstv %s898
        %v901 = vmul.f32 %v900, %v232
        %v902 = vmul.f32 %v900, %v239
        %v905 = vrot.slane %v902, 7
        %v906 = vsel %vm280, %v901, %v905
        %v908 = vadd.f32 %v897, %v906
        %v909 = vstv %s899
        %v910 = vmul.f32 %v909, %v259
        %v911 = vmul.f32 %v909, %v260
        %v914 = vrot.slane %v911, 7
        %v915 = vsel %vm280, %v910, %v914
        %v917 = vadd.f32 %v908, %v915
        %s918 = sld [smem:[#allocation2 + $0x27]]
        %s919 = sld [smem:[#allocation2 + $0x58]]
        %v920 = vstv %s918
        %v921 = vmul.f32 %v920, %v375
        %v922 = vadd.f32 %v917, %v921
        %v923 = vstv %s919
        %v924 = vmul.f32 %v923, %v388
        %v925 = vadd.f32 %v922, %v924
        %s926 = sld [smem:[#allocation2 + $0x28]]
        %s927 = sld [smem:[#allocation2 + $0x59]]
        %v928 = vstv %s926
        %v929 = vmul.f32 %v928, %v405
        %v930 = vadd.f32 %v925, %v929
        %v931 = vstv %s927
        %v932 = vmul.f32 %v931, %v418
        %v933 = vadd.f32 %v930, %v932
        %s934 = sld [smem:[#allocation2 + $0x29]]
        %s935 = sld [smem:[#allocation2 + $0x5a]]
        %v936 = vstv %s934
        %v937 = vmul.f32 %v936, %v435
        %v938 = vadd.f32 %v933, %v937
        %v939 = vstv %s935
        %v940 = vmul.f32 %v939, %v448
        %v941 = vadd.f32 %v938, %v940
        %vm942 = vcmp.ge.s32.totalorder %v261, 4294967294
        %vm943 = vcmp.lt.s32.totalorder %v261, 14
        %vm944 = vmand %vm942, %vm943
        %v946 = vperm.slane %v941, 0
        %v947 = vperm.slane %v941, 1
        %948 = vrot.lane.b32.xlu0 %v946, 96
        %v949 = vpop.permute.xlu0 %948
        %950 = vrot.lane.b32.xlu0 %v947, 96
        %v951 = vpop.permute.xlu0 %950
        %vm952 = vcmask 785408
        %v953 = vsel %vm952, %v949, %v951
        %v956 = vsel %vm952, %v951, %v949
        %v958 = vrot.slane %v956, 7
        %v959 = vsel %vm280, %v953, %v958
        %v961 = vsel %vm944, %v959, 0.0
        %v962 = vadd.f32 %v873, %v961
        %s963 = sld [smem:[#allocation2 + $0x2a]]
        %s964 = sld [smem:[#allocation2 + $0x5b]]
        %v965 = vstv %s963
        %v966 = vmul.f32 %v965, %v283
        %v967 = vadd.f32 %v966, 0.0
        %v968 = vstv %s964
        %v969 = vmul.f32 %v968, %v298
        %v970 = vadd.f32 %v967, %v969
        %s971 = sld [smem:[#allocation2 + $0x2b]]
        %s972 = sld [smem:[#allocation2 + $0x5c]]
        %v973 = vstv %s971
        %v974 = vmul.f32 %v973, %v315
        %v975 = vadd.f32 %v970, %v974
        %v976 = vstv %s972
        %v977 = vmul.f32 %v976, %v328
        %v978 = vadd.f32 %v975, %v977
        %s979 = sld [smem:[#allocation2 + $0x2c]]
        %s980 = sld [smem:[#allocation2 + $0x5d]]
        %v981 = vstv %s979
        %v982 = vmul.f32 %v981, %v345
        %v983 = vadd.f32 %v978, %v982
        %v984 = vstv %s980
        %v985 = vmul.f32 %v984, %v358
        %v986 = vadd.f32 %v983, %v985
        %s987 = sld [smem:[#allocation2 + $0x2d]]
        %s988 = sld [smem:[#allocation2 + $0x5e]]
        %v989 = vstv %s987
        %v990 = vmul.f32 %v989, %v232
        %v991 = vmul.f32 %v989, %v239
        %v994 = vrot.slane %v991, 7
        %v995 = vsel %vm280, %v990, %v994
        %v997 = vadd.f32 %v986, %v995
        %v998 = vstv %s988
        %v999 = vmul.f32 %v998, %v259
        %v1000 = vmul.f32 %v998, %v260
        %v1003 = vrot.slane %v1000, 7
        %v1004 = vsel %vm280, %v999, %v1003
        %v1006 = vadd.f32 %v997, %v1004
        %s1007 = sld [smem:[#allocation2 + $0x2e]]
        %s1008 = sld [smem:[#allocation2 + $0x5f]]
        %v1009 = vstv %s1007
        %v1010 = vmul.f32 %v1009, %v375
        %v1011 = vadd.f32 %v1006, %v1010
        %v1012 = vstv %s1008
        %v1013 = vmul.f32 %v1012, %v388
        %v1014 = vadd.f32 %v1011, %v1013
        %s1015 = sld [smem:[#allocation2 + $0x2f]]
        %s1016 = sld [smem:[#allocation2 + $0x60]]
        %v1017 = vstv %s1015
        %v1018 = vmul.f32 %v1017, %v405
        %v1019 = vadd.f32 %v1014, %v1018
        %v1020 = vstv %s1016
        %v1021 = vmul.f32 %v1020, %v418
        %v1022 = vadd.f32 %v1019, %v1021
        %s1023 = sld [smem:[#allocation2 + $0x30]]
        %s1024 = sld [smem:[#allocation2 + $0x61]]
        %v1025 = vstv %s1023
        %v1026 = vmul.f32 %v1025, %v435
        %v1027 = vadd.f32 %v1022, %v1026
        %v1028 = vstv %s1024
        %v1029 = vmul.f32 %v1028, %v448
        %v1030 = vadd.f32 %v1027, %v1029
        %vm1031 = vcmp.ge.s32.totalorder %v261, 4294967293
        %vm1032 = vcmp.lt.s32.totalorder %v261, 13
        %vm1033 = vmand %vm1031, %vm1032
        %v1035 = vperm.slane %v1030, 0
        %v1036 = vperm.slane %v1030, 1
        %1037 = vrot.lane.b32.xlu0 %v1035, 80
        %v1038 = vpop.permute.xlu0 %1037
        %1039 = vrot.lane.b32.xlu0 %v1036, 80
        %v1040 = vpop.permute.xlu0 %1039
        %vm1041 = vcmask 654336
        %v1042 = vsel %vm1041, %v1038, %v1040
        %v1045 = vsel %vm1041, %v1040, %v1038
        %v1047 = vrot.slane %v1045, 7
        %v1048 = vsel %vm280, %v1042, %v1047
        %v1050 = vsel %vm1033, %v1048, 0.0
        %v1051 = vadd.f32 %v962, %v1050
        %v1052 = vxor.u32 %v1051, 2147483648
        %v1053 = vmul.f32 %v1052, 1.442695
        %v1054 = vpow.pop %v1053
        %v1055 = vadd.f32 %v1054, 1.0
        %v1056 = vrcp.pop %v1055
        %v1057 = vmul.f32 %v1055, %v1056
        %v1058 = vsub.f32 1.0, %v1057
        %v1059 = vmul.f32 %v1056, %v1058
        %v1060 = vadd.f32 %v1056, %v1059
        %vm1061 = vweird.f32 %v1055
        %vm1062 = vweird.f32 %v1056
        %vm1063 = vmor %vm1061, %vm1062
        %v1064 = vsel %vm1063, %v1056, %v1060
        %v1065 = vand.u32 2147483647, %v1055
        %vm1066 = vcmp.eq.f32.partialorder %v1065, 8.507059e+37
        %v1067 = vand.u32 %v1055, 2147483648
        %v1068 = vor.u32 1.1754944e-38, %v1067
        %v1069 = vsel %vm1066, %v1068, %v1064
        %v1070 = vmul.f32 1.0, %v1069
        %v1072 = vperm.slane %v1070, 0
        %v1073 = vperm.slane %v1070, 1
        %v1074 = vrot.slane %v1073, 4
        %v1075 = vsel %vm225, %v1072, %v1074
        %v1077 = vmul.f32 %v218, %v1075
        %1078 = vst [vmem:[%s217] sm:$0xff] %v1077
        %s1079 = sand.u32 %s98, 1
        %s1080 = scalar_lea.sflag [#allocation4], %s1079
        %s1081 = sand.u32 %s98, 1
        %s1082 = smul.addr %s1081, 8
        %s1083 = scalar_lea.vmem [#allocation9], %s1082
        // Predicated region
        $region45: #{tpu_custom_call.1} parent=31 // pred_check
          %p1084 = pneg %p108
        $region46: #{tpu_custom_call.1} parent=31 // pred_check_branch
          %1086 = sbr.rel (%p1084) target = $region48
        $region47: #{tpu_custom_call.1} parent=31 // pred_region
          %1088 = vsyncadd %s1080, 0
          %s1089 = smul.addr %s22, 2
          %s1090 = smul.addr %s1089, 4
          %s1091 = scalar_lea.hbm %s3, %s1090
          %s1093 = sshll.u32 %s1083, 4
          %s1094 = int_to_ptr.vmem [resolvable:$true] %s1093
          %s1095 = sshll.u32 %s1091, 4
          %s1096 = int_to_ptr.hbm [resolvable:$true] %s1095
          %1098 = dma.vmem_to_hbm [thread:$0]  %s1094, 128, %s1096, %s1080
        $region48: #{tpu_custom_call.1} parent=31 // pred_fallthru
          _
      $region32: #{tpu_custom_call.1} parent=5 // pred_fallthru
        _
      %p1099 = scmp.le.s32.totalorder 2, %s17
      // Predicated region
      $region49: #{tpu_custom_call.1} parent=5 // pred_check
        %p1100 = pneg %p1099
      $region50: #{tpu_custom_call.1} parent=5 // pred_check_branch
        %1102 = sbr.rel (%p1100) target = $region52
      $region51: #{tpu_custom_call.1} parent=5 // pred_region
        %s1103 = ssub.s32 %s17, 2
        // Predicated region
        $region53: #{tpu_custom_call.1} parent=51 // pred_check
          %p1104 = pneg %p114
        $region54: #{tpu_custom_call.1} parent=51 // pred_check_branch
          %1106 = sbr.rel (%p1104) target = $region56
        $region55: #{tpu_custom_call.1} parent=51 // pred_region
          %s1107 = sand.u32 %s99, 1
          %s1108 = scalar_lea.sflag [#allocation4], %s1107
          %s1109 = sand.u32 %s99, 1
          %s1110 = smul.addr %s1109, 8
          %s1111 = scalar_lea.vmem [#allocation9], %s1110
          %1113 = dma.done %s1108, 128
        $region56: #{tpu_custom_call.1} parent=51 // pred_fallthru
          _
      $region52: #{tpu_custom_call.1} parent=5 // pred_fallthru
        _
    $region6: #{tpu_custom_call.1} parent=1 // loop_footer
      %s21 = sadd.s32 1, %s17
    $region7: #{tpu_custom_call.1} parent=1 // loop_footer_branch
      %16 = sbr.rel target = $region3
    $region8: #{tpu_custom_call.1} parent=1 // loop_exit
      _
    %1114 = vsyncpa [#allocation3], 1
    %s1115 = scalar_lea.sflag [#allocation3], 1
    %1116 = vsyncpa %s1115, 1
    %1117 = vsyncpa [#allocation8], 1
    %s1118 = scalar_lea.sflag [#allocation8], 1
    %1119 = vsyncpa %s1118, 1
    %1120 = vsyncpa [#allocation4], 1
    %s1121 = scalar_lea.sflag [#allocation4], 1
    %1122 = vsyncpa %s1121, 1
    %1123 = vsyncpa [#allocation5], 1
    %s1124 = scalar_lea.sflag [#allocation5], 1
    %1125 = vsyncpa %s1124, 1

</llo_original>
